<compile_context>
chip_gen: v6e
topology: v6e:2x2x1
jax: 0.10.0
libtpu: 0.0.40
codegen_flags: <defaults>
</compile_context>

<pallas_src>
import functools
import math

import jax
import jax.numpy as jnp
from jax.experimental import pallas as pl
from jax.experimental.pallas import tpu as pltpu


def _timestep_embedding_kernel(t_ref, trig_ref, w1_ref, b1_ref, w2_ref, b2_ref,
                               out_ref, *, act_dtype):
    """One batch tile of the fused sinusoidal encoding + MLP forward.

    t_ref   : [tm, 1]         f32   timestep tile (batch on sublanes)
    trig_ref: [2, d]          f32   row0 = [freqs, freqs], row1 = [0.., pi/2..]
    w1_ref  : [d, 4d]         bf16  first-linear weight (unsplit)
    b1_ref  : [1, 4d]         f32   first-linear bias
    w2_ref  : [4d, d]         bf16  second-linear weight
    b2_ref  : [1, d]          f32   second-linear bias
    out_ref : [tm, d]               embeddings for this batch tile
    """
    t = t_ref[...]                                   # [tm, 1]
    freqs2 = trig_ref[0:1, :]                        # [1, d]
    phase = trig_ref[1:2, :]                         # [1, d]
    # concat([sin(a), cos(a)]) == sin(t*[f,f] + [0, pi/2])  (lane-dense trig)
    ang = t * freqs2 + phase                         # [tm, d] f32
    emb = jnp.sin(ang)                               # f32, EUP

    mm_dtype = w1_ref.dtype
    h = (jnp.dot(emb.astype(mm_dtype), w1_ref[...],
                 preferred_element_type=jnp.float32)
         + b1_ref[...])                              # [tm, 4d] f32
    h = h.astype(act_dtype)
    h = h * jax.nn.sigmoid(h)                        # SiLU (bf16 on v6e/v7x)
    out = (jnp.dot(h.astype(w2_ref.dtype), w2_ref[...],
                   preferred_element_type=jnp.float32)
           + b2_ref[...])                            # [tm, d] f32
    out_ref[...] = out.astype(out_ref.dtype)


def prepare_timestep_embedding_params(w1, b1, w2, b2, *,
                                      matmul_dtype=jnp.bfloat16):
    """One-time (per model) weight preprocessing — hoisted out of the hot path.

    w1: [d, 4d], b1: [4d], w2: [4d, d], b2: [d]  (weights stored (in, out),
    i.e. w = torch_linear.weight.T).
    """
    d_model, hidden = w1.shape
    assert d_model % 2 == 0 and d_model >= 4, "d_model must be even and >= 4"
    assert w2.shape == (hidden, d_model)
    half = d_model // 2

    # Matches PyTorch module exactly (divides by half-1).
    scale = math.log(10000.0) / (half - 1)
    freqs = jnp.exp(jnp.arange(half, dtype=jnp.float32) * -scale)
    freqs2 = jnp.concatenate([freqs, freqs])                       # [d]
    phase = jnp.concatenate([jnp.zeros((half,), jnp.float32),
                             jnp.full((half,), math.pi / 2, jnp.float32)])
    trig = jnp.stack([freqs2, phase], axis=0)                      # [2, d]

    return dict(
        trig=trig,
        w1=w1.astype(matmul_dtype),
        b1=b1.reshape(1, hidden).astype(jnp.float32),
        w2=w2.astype(matmul_dtype),
        b2=b2.reshape(1, d_model).astype(jnp.float32),
        d_model=d_model,
        hidden=hidden,
    )


def timestep_embedding_prepared(timesteps, params, *, block_m=512,
                                act_dtype=jnp.bfloat16,
                                out_dtype=jnp.float32):
    """Hot-path Pallas wrapper taking pre-processed params.

    timesteps: [B] or [B, 1] (any float/int dtype).  Returns [B, d_model].
    """
    if timesteps.ndim == 1:
        timesteps = timesteps[:, None]
    timesteps = timesteps.astype(jnp.float32)
    B = timesteps.shape[0]
    d_model = params["d_model"]
    hidden = params["hidden"]

    def _round_up(x, m):
        return ((x + m - 1) // m) * m

    # --- batch tiling --------------------------------------------------------
    block_m = max(8, min(int(block_m), _round_up(B, 8)))
    block_m = _round_up(block_m, 8)
    # v7x megacore: ensure >= 2 grid steps so the "parallel" axis can shard
    # across both TensorCores (no effect on v5e/v6e beyond pipelining).
    if _round_up(B, block_m) // block_m < 2 and block_m > 8:
        block_m = max(8, _round_up(block_m // 2, 8))
    B_pad = _round_up(B, block_m)
    if B_pad != B:
        timesteps = jnp.pad(timesteps, ((0, B_pad - B), (0, 0)))
    grid = (B_pad // block_m,)

    # --- cost / vmem hints ---------------------------------------------------
    nbytes = lambda a: int(a.size) * a.dtype.itemsize
    weight_bytes = (nbytes(params["w1"]) + nbytes(params["w2"])
                    + nbytes(params["b1"]) + nbytes(params["b2"])
                    + nbytes(params["trig"]))
    out_itemsize = jnp.dtype(out_dtype).itemsize
    # Weights counted ONCE (Buffered(1)); double-buffered t/out tiles; f32
    # intermediates (emb + h) + headroom.
    tile_bytes = (2 * (block_m * 4 + block_m * d_model * out_itemsize)
                  + block_m * d_model * 4 + block_m * hidden * 4)
    budget = weight_bytes + tile_bytes + (2 << 20)
    try:
        cap = int(pltpu.get_tpu_info().vmem_capacity_bytes) * 3 // 4
    except Exception:  # conservative fallback (fits a v7x core)
        cap = 48 * 1024 * 1024
    vmem_limit = int(min(cap, max(4 * 1024 * 1024, budget)))

    cost = pl.CostEstimate(
        flops=4 * B_pad * d_model * hidden,               # two matmuls
        transcendentals=B_pad * (d_model + hidden),       # sin + sigmoid
        bytes_accessed=int(weight_bytes + B_pad * 4
                           + B_pad * d_model * out_itemsize),
    )

    kernel = functools.partial(_timestep_embedding_kernel, act_dtype=act_dtype)

    # Grid-invariant operands: constant block index (resident in VMEM) and,
    # when supported, single-buffered to halve their VMEM footprint.
    def _resident(shape, single_buffer):
        if single_buffer:
            try:
                return pl.BlockSpec(shape, lambda i: (0, 0),
                                    pipeline_mode=pl.Buffered(1))
            except TypeError:
                pass
        return pl.BlockSpec(shape, lambda i: (0, 0))

    def _build(single_buffer):
        return pl.pallas_call(
            kernel,
            out_shape=jax.ShapeDtypeStruct((B_pad, d_model), out_dtype),
            grid_spec=pltpu.PrefetchScalarGridSpec(
                num_scalar_prefetch=0,
                grid=grid,
                in_specs=[
                    pl.BlockSpec((block_m, 1), lambda i: (i, 0)),     # t
                    _resident((2, d_model), single_buffer),           # trig
                    _resident((d_model, hidden), single_buffer),      # w1
                    _resident((1, hidden), single_buffer),            # b1
                    _resident((hidden, d_model), single_buffer),      # w2
                    _resident((1, d_model), single_buffer),           # b2
                ],
                out_specs=pl.BlockSpec((block_m, d_model), lambda i: (i, 0)),
            ),
            compiler_params=pltpu.CompilerParams(
                dimension_semantics=("parallel",),
                vmem_limit_bytes=vmem_limit,
            ),
            cost_estimate=cost,
        )

    args = (timesteps, params["trig"], params["w1"], params["b1"],
            params["w2"], params["b2"])
    try:
        out = _build(single_buffer=True)(*args)
    except Exception:
        # Fallback: identical kernel with default double-buffered operands
        # (only taken if pl.Buffered(1) is not supported by this JAX build).
        out = _build(single_buffer=False)(*args)
    return out[:B]


def timestep_embedding(timesteps, w1, b1, w2, b2, **kwargs):
    """Convenience wrapper: prep weights then run the fused kernel."""
    matmul_dtype = kwargs.pop("matmul_dtype", jnp.bfloat16)
    params = prepare_timestep_embedding_params(w1, b1, w2, b2,
                                               matmul_dtype=matmul_dtype)
    return timestep_embedding_prepared(timesteps, params, **kwargs)


def timestep_embedding_ref(timesteps, w1, b1, w2, b2):
    """Pure-JAX f32 reference mirroring the PyTorch forward."""
    if timesteps.ndim == 1:
        timesteps = timesteps[:, None]
    d_model = w2.shape[1]
    half = d_model // 2
    scale = math.log(10000.0) / (half - 1)
    freqs = jnp.exp(jnp.arange(half, dtype=jnp.float32) * -scale)
    ang = timesteps.astype(jnp.float32) * freqs[None, :]
    emb = jnp.concatenate([jnp.sin(ang), jnp.cos(ang)], axis=-1)
    h = emb @ w1 + b1
    h = h * jax.nn.sigmoid(h)
    return h @ w2 + b2


if __name__ == "__main__":
    # Small shapes consistent with the module: d_model=128 keeps the output
    # lane-dense (last dim == 128 lanes); batch=24 with the default block_m
    # exercises a multi-step "parallel" batch grid with resident weights.
    d_model = 128
    hidden = 4 * d_model
    batch = 24

    key = jax.random.PRNGKey(0)
    k_t, k_w1, k_b1, k_w2, k_b2 = jax.random.split(key, 5)

    w1 = jax.random.normal(k_w1, (d_model, hidden), jnp.float32) / math.sqrt(d_model)
    b1 = jax.random.normal(k_b1, (hidden,), jnp.float32) * 0.01
    w2 = jax.random.normal(k_w2, (hidden, d_model), jnp.float32) / math.sqrt(hidden)
    b2 = jax.random.normal(k_b2, (d_model,), jnp.float32) * 0.01

    # Diffusion-style timesteps in [0, 1000).
    timesteps = jax.random.uniform(k_t, (batch,), jnp.float32, 0.0, 1000.0)

    # One-time weight prep (hoisted out of the per-step hot path).
    params = prepare_timestep_embedding_params(w1, b1, w2, b2)
    out = timestep_embedding_prepared(timesteps, params)
    out = jax.block_until_ready(out)

    ref = timestep_embedding_ref(timesteps, w1, b1, w2, b2)
    assert out.shape == (batch, d_model)
    max_err = float(jnp.max(jnp.abs(out - ref)))
    # bf16 MXU operands / bf16 SiLU with f32 accumulation -> loose tolerance.
    assert jnp.allclose(out, ref, atol=5e-2, rtol=5e-2), (
        f"mismatch vs reference (max abs err {max_err})")

    print("KERNEL_OK")
</pallas_src>

<mosaic_0001>
module attributes {stable_mosaic.version = 11 : i64} {
  func.func @_timestep_embedding_kernel(%arg0: i32, %arg1: memref<16x1xf32, #tpu.memory_space<vmem>>, %arg2: memref<2x128xf32, #tpu.memory_space<vmem>>, %arg3: memref<128x512xbf16, #tpu.memory_space<vmem>>, %arg4: memref<1x512xf32, #tpu.memory_space<vmem>>, %arg5: memref<512x128xbf16, #tpu.memory_space<vmem>>, %arg6: memref<1x128xf32, #tpu.memory_space<vmem>>, %arg7: memref<16x128xf32, #tpu.memory_space<vmem>>) attributes {dimension_semantics = [#tpu.dimension_semantics<parallel>], iteration_bounds = array<i64: 2>, scalar_prefetch = 0 : i64, scratch_operands = 0 : i64, tpu.core_type = #tpu.core_type<tc>, window_params = [{transform_indices = @transform_0, window_bounds = array<i64: 16, 1>}, {pipeline_mode = #tpu.pipeline_mode<synchronous>, transform_indices = @transform_1, window_bounds = array<i64: 2, 128>}, {pipeline_mode = #tpu.pipeline_mode<synchronous>, transform_indices = @transform_2, window_bounds = array<i64: 128, 512>}, {pipeline_mode = #tpu.pipeline_mode<synchronous>, transform_indices = @transform_3, window_bounds = array<i64: 1, 512>}, {pipeline_mode = #tpu.pipeline_mode<synchronous>, transform_indices = @transform_4, window_bounds = array<i64: 512, 128>}, {pipeline_mode = #tpu.pipeline_mode<synchronous>, transform_indices = @transform_5, window_bounds = array<i64: 1, 128>}, {transform_indices = @transform_6, window_bounds = array<i64: 16, 128>}]} {
    %c0 = arith.constant 0 : index
    %c0_0 = arith.constant 0 : index
    %0 = vector.load %arg1[%c0, %c0_0] : memref<16x1xf32, #tpu.memory_space<vmem>>, vector<16x1xf32>
    %c0_1 = arith.constant 0 : index
    %c0_2 = arith.constant 0 : index
    %1 = vector.load %arg2[%c0_1, %c0_2] : memref<2x128xf32, #tpu.memory_space<vmem>>, vector<1x128xf32>
    %c1 = arith.constant 1 : index
    %c0_3 = arith.constant 0 : index
    %2 = vector.load %arg2[%c1, %c0_3] : memref<2x128xf32, #tpu.memory_space<vmem>>, vector<1x128xf32>
    %3 = vector.broadcast %0 : vector<16x1xf32> to vector<16x128xf32>
    %4 = vector.broadcast %1 : vector<1x128xf32> to vector<16x128xf32>
    %5 = arith.mulf %3, %4 : vector<16x128xf32>
    %6 = vector.broadcast %2 : vector<1x128xf32> to vector<16x128xf32>
    %7 = arith.addf %5, %6 : vector<16x128xf32>
    %8 = math.sin %7 : vector<16x128xf32>
    %9 = arith.truncf %8 : vector<16x128xf32> to vector<16x128xbf16>
    %c0_4 = arith.constant 0 : index
    %c0_5 = arith.constant 0 : index
    %10 = vector.load %arg3[%c0_4, %c0_5] : memref<128x512xbf16, #tpu.memory_space<vmem>>, vector<128x512xbf16>
    %cst = arith.constant dense<0.000000e+00> : vector<16x512xf32>
    %11 = tpu.matmul %9, %10, %cst {dimension_numbers = #tpu.dot_dimension_numbers<[1], [0], [0], [1], [0, 0, 1, 1], [], []>} : vector<16x128xbf16>, vector<128x512xbf16>, vector<16x512xf32> -> vector<16x512xf32>
    %c0_6 = arith.constant 0 : index
    %c0_7 = arith.constant 0 : index
    %12 = vector.load %arg4[%c0_6, %c0_7] : memref<1x512xf32, #tpu.memory_space<vmem>>, vector<1x512xf32>
    %13 = vector.broadcast %12 : vector<1x512xf32> to vector<16x512xf32>
    %14 = arith.addf %11, %13 : vector<16x512xf32>
    %15 = arith.truncf %14 : vector<16x512xf32> to vector<16x512xbf16>
    %16 = arith.negf %15 : vector<16x512xbf16>
    %17 = math.exp %16 : vector<16x512xbf16>
    %cst_8 = arith.constant 1.000000e+00 : bf16
    %18 = vector.broadcast %cst_8 : bf16 to vector<16x512xbf16>
    %19 = arith.addf %18, %17 : vector<16x512xbf16>
    %20 = arith.divf %18, %19 : vector<16x512xbf16>
    %21 = arith.mulf %15, %20 : vector<16x512xbf16>
    %c0_9 = arith.constant 0 : index
    %c0_10 = arith.constant 0 : index
    %22 = vector.load %arg5[%c0_9, %c0_10] : memref<512x128xbf16, #tpu.memory_space<vmem>>, vector<512x128xbf16>
    %cst_11 = arith.constant dense<0.000000e+00> : vector<16x128xf32>
    %23 = tpu.matmul %21, %22, %cst_11 {dimension_numbers = #tpu.dot_dimension_numbers<[1], [0], [0], [1], [0, 0, 1, 1], [], []>} : vector<16x512xbf16>, vector<512x128xbf16>, vector<16x128xf32> -> vector<16x128xf32>
    %c0_12 = arith.constant 0 : index
    %c0_13 = arith.constant 0 : index
    %24 = vector.load %arg6[%c0_12, %c0_13] : memref<1x128xf32, #tpu.memory_space<vmem>>, vector<1x128xf32>
    %25 = vector.broadcast %24 : vector<1x128xf32> to vector<16x128xf32>
    %26 = arith.addf %23, %25 : vector<16x128xf32>
    %c0_14 = arith.constant 0 : index
    %c0_15 = arith.constant 0 : index
    %27 = vector.load %arg7[%c0_14, %c0_15] : memref<16x128xf32, #tpu.memory_space<vmem>>, vector<16x128xf32>
    tpu.vector_store %arg7[%c0_14, %c0_15], %26 {strides = array<i32>} : memref<16x128xf32, #tpu.memory_space<vmem>>, vector<16x128xf32>,
    return
  }
  func.func @transform_0(%arg0: i32) -> (i32, i32) {
    %c0_i32 = arith.constant 0 : i32
    %c0_i32_0 = arith.constant 0 : i32
    return %arg0, %c0_i32 : i32, i32
  }
  func.func @transform_1(%arg0: i32) -> (i32, i32) {
    %c0_i32 = arith.constant 0 : i32
    %c0_i32_0 = arith.constant 0 : i32
    %c0_i32_1 = arith.constant 0 : i32
    return %c0_i32, %c0_i32_0 : i32, i32
  }
  func.func @transform_2(%arg0: i32) -> (i32, i32) {
    %c0_i32 = arith.constant 0 : i32
    %c0_i32_0 = arith.constant 0 : i32
    %c0_i32_1 = arith.constant 0 : i32
    return %c0_i32, %c0_i32_0 : i32, i32
  }
  func.func @transform_3(%arg0: i32) -> (i32, i32) {
    %c0_i32 = arith.constant 0 : i32
    %c0_i32_0 = arith.constant 0 : i32
    %c0_i32_1 = arith.constant 0 : i32
    return %c0_i32, %c0_i32_0 : i32, i32
  }
  func.func @transform_4(%arg0: i32) -> (i32, i32) {
    %c0_i32 = arith.constant 0 : i32
    %c0_i32_0 = arith.constant 0 : i32
    %c0_i32_1 = arith.constant 0 : i32
    return %c0_i32, %c0_i32_0 : i32, i32
  }
  func.func @transform_5(%arg0: i32) -> (i32, i32) {
    %c0_i32 = arith.constant 0 : i32
    %c0_i32_0 = arith.constant 0 : i32
    %c0_i32_1 = arith.constant 0 : i32
    return %c0_i32, %c0_i32_0 : i32, i32
  }
  func.func @transform_6(%arg0: i32) -> (i32, i32) {
    %c0_i32 = arith.constant 0 : i32
    %c0_i32_0 = arith.constant 0 : i32
    return %arg0, %c0_i32 : i32, i32
  }
}

module attributes {stable_mosaic.version = 11 : i64} {
  func.func @_timestep_embedding_kernel(%arg0: i32, %arg1: memref<16x1xf32, #tpu.memory_space<vmem>>, %arg2: memref<2x128xf32, #tpu.memory_space<vmem>>, %arg3: memref<128x512xbf16, #tpu.memory_space<vmem>>, %arg4: memref<1x512xf32, #tpu.memory_space<vmem>>, %arg5: memref<512x128xbf16, #tpu.memory_space<vmem>>, %arg6: memref<1x128xf32, #tpu.memory_space<vmem>>, %arg7: memref<16x128xf32, #tpu.memory_space<vmem>>) attributes {dimension_semantics = [#tpu.dimension_semantics<parallel>], iteration_bounds = array<i64: 2>, scalar_prefetch = 0 : i64, scratch_operands = 0 : i64, tpu.core_type = #tpu.core_type<tc>, window_params = [{transform_indices = @transform_0, window_bounds = array<i64: 16, 1>}, {pipeline_mode = #tpu.pipeline_mode<synchronous>, transform_indices = @transform_1, window_bounds = array<i64: 2, 128>}, {pipeline_mode = #tpu.pipeline_mode<synchronous>, transform_indices = @transform_2, window_bounds = array<i64: 128, 512>}, {pipeline_mode = #tpu.pipeline_mode<synchronous>, transform_indices = @transform_3, window_bounds = array<i64: 1, 512>}, {pipeline_mode = #tpu.pipeline_mode<synchronous>, transform_indices = @transform_4, window_bounds = array<i64: 512, 128>}, {pipeline_mode = #tpu.pipeline_mode<synchronous>, transform_indices = @transform_5, window_bounds = array<i64: 1, 128>}, {transform_indices = @transform_6, window_bounds = array<i64: 16, 128>}]} {
    %c0 = arith.constant 0 : index
    %c0_0 = arith.constant 0 : index
    %0 = vector.load %arg1[%c0, %c0_0] : memref<16x1xf32, #tpu.memory_space<vmem>>, vector<16x1xf32>
    %c0_1 = arith.constant 0 : index
    %c0_2 = arith.constant 0 : index
    %1 = vector.load %arg2[%c0_1, %c0_2] : memref<2x128xf32, #tpu.memory_space<vmem>>, vector<1x128xf32>
    %c1 = arith.constant 1 : index
    %c0_3 = arith.constant 0 : index
    %2 = vector.load %arg2[%c1, %c0_3] : memref<2x128xf32, #tpu.memory_space<vmem>>, vector<1x128xf32>
    %3 = vector.broadcast %0 : vector<16x1xf32> to vector<16x128xf32>
    %4 = vector.broadcast %1 : vector<1x128xf32> to vector<16x128xf32>
    %5 = arith.mulf %3, %4 : vector<16x128xf32>
    %6 = vector.broadcast %2 : vector<1x128xf32> to vector<16x128xf32>
    %7 = arith.addf %5, %6 : vector<16x128xf32>
    %8 = math.sin %7 : vector<16x128xf32>
    %9 = arith.truncf %8 : vector<16x128xf32> to vector<16x128xbf16>
    %c0_4 = arith.constant 0 : index
    %c0_5 = arith.constant 0 : index
    %10 = vector.load %arg3[%c0_4, %c0_5] : memref<128x512xbf16, #tpu.memory_space<vmem>>, vector<128x512xbf16>
    %cst = arith.constant dense<0.000000e+00> : vector<16x512xf32>
    %11 = tpu.matmul %9, %10, %cst {dimension_numbers = #tpu.dot_dimension_numbers<[1], [0], [0], [1], [0, 0, 1, 1], [], []>} : vector<16x128xbf16>, vector<128x512xbf16>, vector<16x512xf32> -> vector<16x512xf32>
    %c0_6 = arith.constant 0 : index
    %c0_7 = arith.constant 0 : index
    %12 = vector.load %arg4[%c0_6, %c0_7] : memref<1x512xf32, #tpu.memory_space<vmem>>, vector<1x512xf32>
    %13 = vector.broadcast %12 : vector<1x512xf32> to vector<16x512xf32>
    %14 = arith.addf %11, %13 : vector<16x512xf32>
    %15 = arith.truncf %14 : vector<16x512xf32> to vector<16x512xbf16>
    %16 = arith.negf %15 : vector<16x512xbf16>
    %17 = math.exp %16 : vector<16x512xbf16>
    %cst_8 = arith.constant 1.000000e+00 : bf16
    %18 = vector.broadcast %cst_8 : bf16 to vector<16x512xbf16>
    %19 = arith.addf %18, %17 : vector<16x512xbf16>
    %20 = arith.divf %18, %19 : vector<16x512xbf16>
    %21 = arith.mulf %15, %20 : vector<16x512xbf16>
    %c0_9 = arith.constant 0 : index
    %c0_10 = arith.constant 0 : index
    %22 = vector.load %arg5[%c0_9, %c0_10] : memref<512x128xbf16, #tpu.memory_space<vmem>>, vector<512x128xbf16>
    %cst_11 = arith.constant dense<0.000000e+00> : vector<16x128xf32>
    %23 = tpu.matmul %21, %22, %cst_11 {dimension_numbers = #tpu.dot_dimension_numbers<[1], [0], [0], [1], [0, 0, 1, 1], [], []>} : vector<16x512xbf16>, vector<512x128xbf16>, vector<16x128xf32> -> vector<16x128xf32>
    %c0_12 = arith.constant 0 : index
    %c0_13 = arith.constant 0 : index
    %24 = vector.load %arg6[%c0_12, %c0_13] : memref<1x128xf32, #tpu.memory_space<vmem>>, vector<1x128xf32>
    %25 = vector.broadcast %24 : vector<1x128xf32> to vector<16x128xf32>
    %26 = arith.addf %23, %25 : vector<16x128xf32>
    %c0_14 = arith.constant 0 : index
    %c0_15 = arith.constant 0 : index
    %27 = vector.load %arg7[%c0_14, %c0_15] : memref<16x128xf32, #tpu.memory_space<vmem>>, vector<16x128xf32>
    tpu.vector_store %arg7[%c0_14, %c0_15], %26 {strides = array<i32>} : memref<16x128xf32, #tpu.memory_space<vmem>>, vector<16x128xf32>,
    return
  }
  func.func @transform_0(%arg0: i32) -> (i32, i32) {
    %c0_i32 = arith.constant 0 : i32
    %c0_i32_0 = arith.constant 0 : i32
    return %arg0, %c0_i32 : i32, i32
  }
  func.func @transform_1(%arg0: i32) -> (i32, i32) {
    %c0_i32 = arith.constant 0 : i32
    %c0_i32_0 = arith.constant 0 : i32
    %c0_i32_1 = arith.constant 0 : i32
    return %c0_i32, %c0_i32_0 : i32, i32
  }
  func.func @transform_2(%arg0: i32) -> (i32, i32) {
    %c0_i32 = arith.constant 0 : i32
    %c0_i32_0 = arith.constant 0 : i32
    %c0_i32_1 = arith.constant 0 : i32
    return %c0_i32, %c0_i32_0 : i32, i32
  }
  func.func @transform_3(%arg0: i32) -> (i32, i32) {
    %c0_i32 = arith.constant 0 : i32
    %c0_i32_0 = arith.constant 0 : i32
    %c0_i32_1 = arith.constant 0 : i32
    return %c0_i32, %c0_i32_0 : i32, i32
  }
  func.func @transform_4(%arg0: i32) -> (i32, i32) {
    %c0_i32 = arith.constant 0 : i32
    %c0_i32_0 = arith.constant 0 : i32
    %c0_i32_1 = arith.constant 0 : i32
    return %c0_i32, %c0_i32_0 : i32, i32
  }
  func.func @transform_5(%arg0: i32) -> (i32, i32) {
    %c0_i32 = arith.constant 0 : i32
    %c0_i32_0 = arith.constant 0 : i32
    %c0_i32_1 = arith.constant 0 : i32
    return %c0_i32, %c0_i32_0 : i32, i32
  }
  func.func @transform_6(%arg0: i32) -> (i32, i32) {
    %c0_i32 = arith.constant 0 : i32
    %c0_i32_0 = arith.constant 0 : i32
    return %arg0, %c0_i32 : i32, i32
  }
}

</mosaic_0001>

<llo_original>
// kernel: tpu_custom_call.1
$region0: #{tpu_custom_call.1}
  #allocation0 [shape = 'u32[]', space=smem, size = 0x4, offset = 0x4, fixed_abs, tag = 'smem constant byte address 0x4 - core index']
  #allocation1 [shape = 'u32[144,128]{1,0:T(1,128)}', space=vmem, size = 0x12000, scoped, tag = 'internal scratch']
  %s0 = inlined_call_operand.vmem [shape: f32[32,1], index: 0, kind: input, shape index: {}]
  %s1 = inlined_call_operand.vmem [shape: f32[2,128], index: 1, kind: input, shape index: {}]
  %s2 = inlined_call_operand.hbm [shape: bf16[128,512], index: 2, kind: input, shape index: {}]
  %s3 = inlined_call_operand.vmem [shape: f32[1,512], index: 3, kind: input, shape index: {}]
  %s4 = inlined_call_operand.hbm [shape: bf16[512,128], index: 4, kind: input, shape index: {}]
  %s5 = inlined_call_operand.vmem [shape: f32[1,128], index: 5, kind: input, shape index: {}]
  %s6 = inlined_call_operand.hbm [shape: f32[32,128], index: 6, kind: output, shape index: {}]
  %s7 = sld [smem:[#allocation0]]
  $region65: #{tpu_custom_call.1} parent=0
    _
  %s9 = ssub.s32 1, %s7
  %s10 = scalar_select 0, %s9, %s7
  $region1: #{tpu_custom_call.1} parent=0
    #allocation2 [shape = 'u8[131072]{0}', space=vmem, size = 0x20000, scoped, tag = 'input window, operand 2, single buffered']
    #allocation3 [shape = 's32[2]{0}', space=sflag, size = 0x8, scoped, tag = 'scoped memory for tpu_custom_call.1']
    #allocation4 [shape = 's32[2]{0}', space=sflag, size = 0x8, scoped, tag = 'scoped memory for tpu_custom_call.1']
    #allocation5 [shape = 'u8[131072]{0}', space=vmem, size = 0x20000, scoped, tag = 'input window, operand 4, single buffered']
    #allocation6 [shape = 's32[1]{0}', space=sflag, size = 0x4, scoped, tag = 'scoped memory for tpu_custom_call.1']
    #allocation7 [shape = 'u8[16384]{0}', space=vmem, size = 0x4000, scoped, tag = 'output window, operand 0']
    %11 = vsyncpa [#allocation3], 0
    %12 = vsyncpa [#allocation6], 0
    %13 = vsyncpa [#allocation4], 0
    %s14 = scalar_lea.sflag [#allocation4], 1
    %15 = vsyncpa %s14, 0
    loop: start=0, step=1, limit=4
    $region2: #{tpu_custom_call.1} parent=1 // loop_pre_header
      _
    $region3: #{tpu_custom_call.1} parent=1 // loop_header
      %s17 = sphi 0, %s21
      %p18 = scmp.ge.s32.totalorder %s17, 4
      %s27 = sphi 0, %s29
      %s30 = sphi 0, %s27
      %s31 = sphi 0, %s30
      %s47 = sphi 0, %s31
      %s51 = sphi 0, %s51
      %s53 = sphi 0, %s51
      %s54 = sphi 0, %s53
      %s68 = sphi 0, %s54
      %s72 = sphi 0, %s72
      %s74 = sphi 0, %s72
      %s75 = sphi 0, %s74
      %s89 = sphi 0, %s75
      %s93 = sphi 0, %s93
      %s95 = sphi 0, %s93
      %s96 = sphi 0, %s95
      %s110 = sphi 0, %s96
      %s114 = sphi 0, %s114
      %s116 = sphi 0, %s114
      %s117 = sphi 0, %s116
      %s131 = sphi 0, %s117
      %s135 = sphi 0, %s135
      %s137 = sphi 0, %s135
      %s138 = sphi 0, %s137
      %s152 = sphi 0, %s138
      %s158 = sphi 0, %s160
      %s161 = sphi 0, %s158
      %s162 = sphi 0, %s161
      %s178 = sphi 0, %s162
    $region4: #{tpu_custom_call.1} parent=1 // loop_header_branch
      %20 = sbr.rel (%p18) target = $region8
    $region5: #{tpu_custom_call.1} parent=1 // loop_body
      %s22 = ssub.s32 %s17, 1
      %s23 = ssub.s32 %s17, 2
      %s24 = sadd.s32 %s17, 1
      %s25 = ssub.s32 %s17, %s24
      %p26 = scmp.eq.s32.totalorder %s25, 0
      %s28 = sadd.s32 %s27, 1
      %s29 = scalar_select %p26, %s27, %s28
      %p32 = pneg %p26
      %p33 = scmp.eq.s32.totalorder %s17, 1
      %p34 = por %p32, %p33
      %p35 = scmp.ne.s32.totalorder %s27, %s30
      %p36 = scmp.eq.s32.totalorder %s17, 0
      %p37 = por %p35, %p36
      %p38 = scmp.ne.s32.totalorder %s27, %s30
      %p39 = scmp.eq.s32.totalorder %s22, 1
      %p40 = por %p38, %p39
      %p41 = scmp.ne.s32.totalorder %s30, %s31
      %p42 = scmp.eq.s32.totalorder %s22, 0
      %p43 = por %p41, %p42
      %p44 = scmp.ne.s32.totalorder %s30, %s31
      %p45 = scmp.eq.s32.totalorder %s23, 1
      %p46 = por %p44, %p45
      %p48 = scmp.ne.s32.totalorder %s31, %s47
      %p49 = scmp.eq.s32.totalorder %s23, 0
      %p50 = por %p48, %p49
      %s52 = sadd.s32 %s51, 1
      %p55 = scmp.eq.s32.totalorder %s17, 1
      %p56 = scmp.ne.s32.totalorder %s51, %s53
      %p57 = scmp.eq.s32.totalorder %s17, 0
      %p58 = por %p56, %p57
      %p59 = scmp.ne.s32.totalorder %s51, %s53
      %p60 = scmp.eq.s32.totalorder %s22, 1
      %p61 = por %p59, %p60
      %p62 = scmp.ne.s32.totalorder %s53, %s54
      %p63 = scmp.eq.s32.totalorder %s22, 0
      %p64 = por %p62, %p63
      %p65 = scmp.ne.s32.totalorder %s53, %s54
      %p66 = scmp.eq.s32.totalorder %s23, 1
      %p67 = por %p65, %p66
      %p69 = scmp.ne.s32.totalorder %s54, %s68
      %p70 = scmp.eq.s32.totalorder %s23, 0
      %p71 = por %p69, %p70
      %s73 = sadd.s32 %s72, 1
      %p76 = scmp.eq.s32.totalorder %s17, 1
      %p77 = scmp.ne.s32.totalorder %s72, %s74
      %p78 = scmp.eq.s32.totalorder %s17, 0
      %p79 = por %p77, %p78
      %p80 = scmp.ne.s32.totalorder %s72, %s74
      %p81 = scmp.eq.s32.totalorder %s22, 1
      %p82 = por %p80, %p81
      %p83 = scmp.ne.s32.totalorder %s74, %s75
      %p84 = scmp.eq.s32.totalorder %s22, 0
      %p85 = por %p83, %p84
      %p86 = scmp.ne.s32.totalorder %s74, %s75
      %p87 = scmp.eq.s32.totalorder %s23, 1
      %p88 = por %p86, %p87
      %p90 = scmp.ne.s32.totalorder %s75, %s89
      %p91 = scmp.eq.s32.totalorder %s23, 0
      %p92 = por %p90, %p91
      %s94 = sadd.s32 %s93, 1
      %p97 = scmp.eq.s32.totalorder %s17, 1
      %p98 = scmp.ne.s32.totalorder %s93, %s95
      %p99 = scmp.eq.s32.totalorder %s17, 0
      %p100 = por %p98, %p99
      %p101 = scmp.ne.s32.totalorder %s93, %s95
      %p102 = scmp.eq.s32.totalorder %s22, 1
      %p103 = por %p101, %p102
      %p104 = scmp.ne.s32.totalorder %s95, %s96
      %p105 = scmp.eq.s32.totalorder %s22, 0
      %p106 = por %p104, %p105
      %p107 = scmp.ne.s32.totalorder %s95, %s96
      %p108 = scmp.eq.s32.totalorder %s23, 1
      %p109 = por %p107, %p108
      %p111 = scmp.ne.s32.totalorder %s96, %s110
      %p112 = scmp.eq.s32.totalorder %s23, 0
      %p113 = por %p111, %p112
      %s115 = sadd.s32 %s114, 1
      %p118 = scmp.eq.s32.totalorder %s17, 1
      %p119 = scmp.ne.s32.totalorder %s114, %s116
      %p120 = scmp.eq.s32.totalorder %s17, 0
      %p121 = por %p119, %p120
      %p122 = scmp.ne.s32.totalorder %s114, %s116
      %p123 = scmp.eq.s32.totalorder %s22, 1
      %p124 = por %p122, %p123
      %p125 = scmp.ne.s32.totalorder %s116, %s117
      %p126 = scmp.eq.s32.totalorder %s22, 0
      %p127 = por %p125, %p126
      %p128 = scmp.ne.s32.totalorder %s116, %s117
      %p129 = scmp.eq.s32.totalorder %s23, 1
      %p130 = por %p128, %p129
      %p132 = scmp.ne.s32.totalorder %s117, %s131
      %p133 = scmp.eq.s32.totalorder %s23, 0
      %p134 = por %p132, %p133
      %s136 = sadd.s32 %s135, 1
      %p139 = scmp.eq.s32.totalorder %s17, 1
      %p140 = scmp.ne.s32.totalorder %s135, %s137
      %p141 = scmp.eq.s32.totalorder %s17, 0
      %p142 = por %p140, %p141
      %p143 = scmp.ne.s32.totalorder %s135, %s137
      %p144 = scmp.eq.s32.totalorder %s22, 1
      %p145 = por %p143, %p144
      %p146 = scmp.ne.s32.totalorder %s137, %s138
      %p147 = scmp.eq.s32.totalorder %s22, 0
      %p148 = por %p146, %p147
      %p149 = scmp.ne.s32.totalorder %s137, %s138
      %p150 = scmp.eq.s32.totalorder %s23, 1
      %p151 = por %p149, %p150
      %p153 = scmp.ne.s32.totalorder %s138, %s152
      %p154 = scmp.eq.s32.totalorder %s23, 0
      %p155 = por %p153, %p154
      %s156 = ssub.s32 %s17, %s24
      %p157 = scmp.eq.s32.totalorder %s156, 0
      %s159 = sadd.s32 %s158, 1
      %s160 = scalar_select %p157, %s158, %s159
      %p163 = pneg %p157
      %p164 = scmp.eq.s32.totalorder %s17, 1
      %p165 = por %p163, %p164
      %p166 = scmp.ne.s32.totalorder %s158, %s161
      %p167 = scmp.eq.s32.totalorder %s17, 0
      %p168 = por %p166, %p167
      %p169 = scmp.ne.s32.totalorder %s158, %s161
      %p170 = scmp.eq.s32.totalorder %s22, 1
      %p171 = por %p169, %p170
      %p172 = scmp.ne.s32.totalorder %s161, %s162
      %p173 = scmp.eq.s32.totalorder %s22, 0
      %p174 = por %p172, %p173
      %p175 = scmp.ne.s32.totalorder %s161, %s162
      %p176 = scmp.eq.s32.totalorder %s23, 1
      %p177 = por %p175, %p176
      %p179 = scmp.ne.s32.totalorder %s162, %s178
      %p180 = scmp.eq.s32.totalorder %s23, 0
      %p181 = por %p179, %p180
      %p182 = scmp.le.s32.totalorder 1, %s17
      %p183 = scmp.lt.s32.totalorder %s17, 3
      %p184 = pnand %p182, %p183
      %p185 = pneg %p184
      // Predicated region
      $region9: #{tpu_custom_call.1} parent=5 // pred_check
        _
      $region10: #{tpu_custom_call.1} parent=5 // pred_check_branch
        %187 = sbr.rel (%p184) target = $region12
      $region11: #{tpu_custom_call.1} parent=5 // pred_region
        %s188 = ssub.s32 %s17, 1
        // Predicated region
        $region13: #{tpu_custom_call.1} parent=11 // pred_check
          %p189 = pneg %p64
        $region14: #{tpu_custom_call.1} parent=11 // pred_check_branch
          %191 = sbr.rel (%p189) target = $region16
        $region15: #{tpu_custom_call.1} parent=11 // pred_region
          _
        $region16: #{tpu_custom_call.1} parent=11 // pred_fallthru
          _
        // Predicated region
        $region17: #{tpu_custom_call.1} parent=11 // pred_check
          %p192 = pneg %p85
        $region18: #{tpu_custom_call.1} parent=11 // pred_check_branch
          %194 = sbr.rel (%p192) target = $region20
        $region19: #{tpu_custom_call.1} parent=11 // pred_region
          %s196 = ssub.s32 4096, 4096
          %197 = vsyncadd [#allocation3], %s196
          %s198 = sshll.u32 [#allocation2], 4
          %s199 = int_to_ptr.vmem [resolvable:$true] %s198
          %204 = dma.hbm_to_vmem [thread:$0]  %s2, 4096, %s199, [#allocation3], 256, 256, 16
        $region20: #{tpu_custom_call.1} parent=11 // pred_fallthru
          _
        // Predicated region
        $region21: #{tpu_custom_call.1} parent=11 // pred_check
          %p205 = pneg %p106
        $region22: #{tpu_custom_call.1} parent=11 // pred_check_branch
          %207 = sbr.rel (%p205) target = $region24
        $region23: #{tpu_custom_call.1} parent=11 // pred_region
          _
        $region24: #{tpu_custom_call.1} parent=11 // pred_fallthru
          _
        // Predicated region
        $region25: #{tpu_custom_call.1} parent=11 // pred_check
          %p208 = pneg %p127
        $region26: #{tpu_custom_call.1} parent=11 // pred_check_branch
          %210 = sbr.rel (%p208) target = $region28
        $region27: #{tpu_custom_call.1} parent=11 // pred_region
          %s212 = ssub.s32 4096, 4096
          %213 = vsyncadd [#allocation6], %s212
          %s214 = sshll.u32 [#allocation5], 4
          %s215 = int_to_ptr.vmem [resolvable:$true] %s214
          %220 = dma.hbm_to_vmem [thread:$0]  %s4, 4096, %s215, [#allocation6], 64, 64, 4
        $region28: #{tpu_custom_call.1} parent=11 // pred_fallthru
          _
        // Predicated region
        $region29: #{tpu_custom_call.1} parent=11 // pred_check
          %p221 = pneg %p148
        $region30: #{tpu_custom_call.1} parent=11 // pred_check_branch
          %223 = sbr.rel (%p221) target = $region32
        $region31: #{tpu_custom_call.1} parent=11 // pred_region
          _
        $region32: #{tpu_custom_call.1} parent=11 // pred_fallthru
          _
      $region12: #{tpu_custom_call.1} parent=5 // pred_fallthru
        _
      %p224 = scmp.lt.s32.totalorder %s17, 2
      // Predicated region
      $region33: #{tpu_custom_call.1} parent=5 // pred_check
        %p225 = pneg %p224
      $region34: #{tpu_custom_call.1} parent=5 // pred_check_branch
        %227 = sbr.rel (%p225) target = $region36
      $region35: #{tpu_custom_call.1} parent=5 // pred_region
        // Predicated region
        $region37: #{tpu_custom_call.1} parent=35 // pred_check
          %p228 = pneg %p37
        $region38: #{tpu_custom_call.1} parent=35 // pred_check_branch
          %230 = sbr.rel (%p228) target = $region40
        $region39: #{tpu_custom_call.1} parent=35 // pred_region
          %s231 = smul.u32 2, %s17
          %p232 = scmp.lt.s32.totalorder %s231, 3
          %s233 = scalar_select %p232, %s231, 3
          %s234 = smul.addr %s233, 8
          %s235 = scalar_lea.vmem %s0, %s234
          %s236 = smul.u32 2, %s17
        $region40: #{tpu_custom_call.1} parent=35 // pred_fallthru
          _
      $region36: #{tpu_custom_call.1} parent=5 // pred_fallthru
        _
      %p237 = scmp.le.s32.totalorder 1, %s17
      %p238 = scmp.lt.s32.totalorder %s17, 3
      %p239 = pnand %p237, %p238
      %p240 = pneg %p239
      // Predicated region
      $region41: #{tpu_custom_call.1} parent=5 // pred_check
        _
      $region42: #{tpu_custom_call.1} parent=5 // pred_check_branch
        %242 = sbr.rel (%p239) target = $region44
      $region43: #{tpu_custom_call.1} parent=5 // pred_region
        %s243 = ssub.s32 %s17, 1
        // Predicated region
        $region45: #{tpu_custom_call.1} parent=43 // pred_check
          %p244 = pneg %p85
        $region46: #{tpu_custom_call.1} parent=43 // pred_check_branch
          %246 = sbr.rel (%p244) target = $region48
        $region47: #{tpu_custom_call.1} parent=43 // pred_region
          %247 = dma.done [#allocation3], 4096
        $region48: #{tpu_custom_call.1} parent=43 // pred_fallthru
          _
        // Predicated region
        $region49: #{tpu_custom_call.1} parent=43 // pred_check
          %p248 = pneg %p127
        $region50: #{tpu_custom_call.1} parent=43 // pred_check_branch
          %250 = sbr.rel (%p248) target = $region52
        $region51: #{tpu_custom_call.1} parent=43 // pred_region
          %251 = dma.done [#allocation6], 4096
        $region52: #{tpu_custom_call.1} parent=43 // pred_fallthru
          _
        %s252 = smul.u32 2, %s22
        %p253 = scmp.lt.s32.totalorder %s252, 3
        %s254 = scalar_select %p253, %s252, 3
        %s255 = smul.addr %s254, 8
        %s256 = scalar_lea.vmem %s0, %s255
        %p257 = pneg %p43
        %p258 = pneg %p40
        %p259 = pneg %p64
        %p260 = pneg %p61
        %p261 = pneg %p85
        %p262 = pneg %p82
        %p263 = pneg %p106
        %p264 = pneg %p103
        %p265 = pneg %p127
        %p266 = pneg %p124
        %p267 = pneg %p148
        %p268 = pneg %p145
        %p269 = pneg %p174
        %p270 = pneg %p171
        %s271 = sand.u32 %s161, 1
        %s272 = scalar_lea.sflag [#allocation4], %s271
        %s273 = sand.u32 %s161, 1
        %s274 = smul.addr %s273, 16
        %s275 = scalar_lea.vmem [#allocation7], %s274
        %s276 = smul.u32 2, %s22
        %p277 = scmp.lt.s32.totalorder %s276, 3
        %s278 = scalar_select %p277, %s276, 3
        %s279 = smul.addr %s278, 8
        %s280 = scalar_lea.vmem %s0, %s279
        %s281 = smul.u32 2, %s22
        %s282 = smul.u32 2, %s22
        %v285 = vld [vmem:[%s280] sm:$0xff]
        %v286 = vld [vmem:[%s280 + $0x8] sm:$0xff]
        %v287 = vld [vmem:[%s1] sm:$0x1]
        %v288 = vld [vmem:[%s1 + $0x1] sm:$0x1]
        %290 = vset.pattern.permute.xlu0 0
        %291 = vperm.xlu0 %290, %v285
        %v292 = vpop.permute.xlu0 %291
        %295 = vset.pattern.permute.xlu0 0
        %296 = vperm.xlu0 %295, %v286
        %v297 = vpop.permute.xlu0 %296
        %v299 = vlaneseq
        %v300 = vshrl.u32 %v299, 7
        %v301 = vsub.s32 0, %v300
        %v302 = vrot.slane %v287, %v301
        %v303 = vmul.f32 %v292, %v302
        %v304 = vmul.f32 %v297, %v302
        %v305 = vlaneseq
        %v306 = vshrl.u32 %v305, 7
        %v307 = vsub.s32 0, %v306
        %v308 = vrot.slane %v288, %v307
        %v309 = vadd.f32 %v303, %v308
        %v310 = vadd.f32 %v304, %v308
        %v311 = vand.u32 2147483647, %v309
        %vm312 = vcmp.le.f32.partialorder %v311, 0.7853982
        %vm313 = vcmp.lt.s32.totalorder %v309, 0
        %v314 = vand.u32 %v309, 2139095040
        %v315 = vshrl.u32 %v314, 23
        %v316 = vsub.s32 %v315, 127
        %v317 = vand.u32 2147483647, %v309
        %v318 = vand.u32 %v317, 8388607
        %v319 = vor.u32 %v318, 8388608
        %v320 = vsub.s32 0, %v319
        %v321 = vadd.s32 %v316, 1
        %vm322 = vcmp.gt.s32.totalorder %v321, 0
        %v323 = vsel %vm322, %v321, 0
        %v324 = vshrl.u32 %v323, 5
        %v325 = vand.u32 %v323, 31
        %v326 = vsub.s32 32, %v325
        %v327 = vshrl.u32 683565275, %v326
        %v328 = vshll.u32 683565275, %v325
        %v329 = vshrl.u32 2475754826, %v326
        %v330 = vor.u32 %v328, %v329
        %v331 = vshll.u32 2475754826, %v325
        %v332 = vshrl.u32 2131351028, %v326
        %v333 = vor.u32 %v331, %v332
        %v334 = vshll.u32 2131351028, %v325
        %v335 = vshrl.u32 2102212464, %v326
        %v336 = vor.u32 %v334, %v335
        %v337 = vshll.u32 2102212464, %v325
        %v338 = vshrl.u32 920167782, %v326
        %v339 = vor.u32 %v337, %v338
        %v340 = vshll.u32 920167782, %v325
        %v341 = vshrl.u32 1326507024, %v326
        %v342 = vor.u32 %v340, %v341
        %vm343 = vcmp.lt.s32.totalorder %v324, 1
        %vm344 = vcmp.lt.s32.totalorder %v324, 2
        %vm345 = vcmp.lt.s32.totalorder %v324, 3
        %vm346 = vcmp.lt.s32.totalorder %v324, 4
        %v347 = vsel %vm343, %v327, %v330
        %v348 = vsel %vm346, %v336, 2102212464
        %v349 = vsel %vm345, %v333, %v348
        %v350 = vsel %vm344, %v347, %v349
        %v351 = vsel %vm343, %v330, %v333
        %v352 = vsel %vm346, %v339, 920167782
        %v353 = vsel %vm345, %v336, %v352
        %v354 = vsel %vm344, %v351, %v353
        %v355 = vsel %vm343, %v333, %v336
        %v356 = vsel %vm346, %v342, 1326507024
        %v357 = vsel %vm345, %v339, %v356
        %v358 = vsel %vm344, %v355, %v357
        %v359 = vshll.u32 %v319, 8
        %v360 = vmul.u32.u64.compose %v359, %v358
        %v361 = vextract.low.u32 %v360
        %v362 = vextract.high.u32 %v360
        %v363 = vmul.u32.u64.compose %v359, %v354
        %v364 = vextract.low.u32 %v363
        %v365 = vextract.high.u32 %v363
        %v366 = vmul.u32 %v359, %v350
        %v367 = vadd.s32 %v362, %v364
        %vm368 = vc.u32 %v362, %v364
        %v369 = vadd.s32 %v365, 1
        %v370 = vsel %vm368, %v369, %v365
        %v371 = vadd.s32 %v366, %v370
        %v372 = vadd.s32 %v371, 536870912
        %v373 = vshrl.u32 %v372, 30
        %v374 = vshll.u32 %v373, 30
        %v375 = vsub.s32 %v371, %v374
        %vm376 = vcmp.lt.s32.totalorder %v375, 0
        %v377 = vsub.s32 0, %v375
        %v378 = vsel %vm376, %v377, %v375
        %v379 = vclz %v378
        %v380 = vsub.s32 %v379, 2
        %vm381 = vcmp.gt.s32.totalorder 0, %v380
        %v382 = vsel %vm381, 0, %v380
        %v383 = vsub.s32 32, %v382
        %v384 = vshll.u32 %v375, %v382
        %v385 = vshrl.u32 %v367, %v383
        %v386 = vor.u32 %v384, %v385
        %v387 = vsub.s32 4294967266, %v382
        %v388 = vadd.s32 %v387, 127
        %v389 = vshll.u32 %v388, 23
        %v390 = vor.u32 4788187, %v389
        %v391 = vand.u32 2147483647, %v390
        %v393 = vcvt.s32.f32 %v386
        %v394 = vmul.f32 %v393, %v391
        %v395 = vxor.u32 %v394, 2147483648
        %v396 = vsel %vm313, %v395, %v394
        %v397 = vsub.s32 4, %v373
        %v398 = vsel %vm313, %v397, %v373
        %v399 = vsel %vm312, %v309, %v396
        %v400 = vsel %vm312, 0, %v398
        %v401 = vcosq.f32.pop %v399
        %v402 = vsinq.f32.pop %v399
        %vm403 = vweird.f32 %v309
        %v404 = vadd.s32 %v400, 3
        %v405 = vand.u32 %v404, 3
        %vm406 = vcmp.lt.s32.totalorder %v405, 2
        %vm407 = vcmp.eq.s32.totalorder %v405, 0
        %v408 = vxor.u32 %v402, 2147483648
        %v409 = vsel %vm407, %v401, %v408
        %vm410 = vcmp.eq.s32.totalorder %v405, 2
        %v411 = vxor.u32 %v401, 2147483648
        %v412 = vsel %vm410, %v411, %v402
        %v413 = vsel %vm406, %v409, %v412
        %v414 = vsel %vm403, nan, %v413
        %v415 = vand.u32 2147483647, %v310
        %vm416 = vcmp.le.f32.partialorder %v415, 0.7853982
        %vm417 = vcmp.lt.s32.totalorder %v310, 0
        %v418 = vand.u32 %v310, 2139095040
        %v419 = vshrl.u32 %v418, 23
        %v420 = vsub.s32 %v419, 127
        %v421 = vand.u32 2147483647, %v310
        %v422 = vand.u32 %v421, 8388607
        %v423 = vor.u32 %v422, 8388608
        %v424 = vsub.s32 0, %v423
        %v425 = vadd.s32 %v420, 1
        %vm426 = vcmp.gt.s32.totalorder %v425, 0
        %v427 = vsel %vm426, %v425, 0
        %v428 = vshrl.u32 %v427, 5
        %v429 = vand.u32 %v427, 31
        %v430 = vsub.s32 32, %v429
        %v431 = vshrl.u32 683565275, %v430
        %v432 = vshll.u32 683565275, %v429
        %v433 = vshrl.u32 2475754826, %v430
        %v434 = vor.u32 %v432, %v433
        %v435 = vshll.u32 2475754826, %v429
        %v436 = vshrl.u32 2131351028, %v430
        %v437 = vor.u32 %v435, %v436
        %v438 = vshll.u32 2131351028, %v429
        %v439 = vshrl.u32 2102212464, %v430
        %v440 = vor.u32 %v438, %v439
        %v441 = vshll.u32 2102212464, %v429
        %v442 = vshrl.u32 920167782, %v430
        %v443 = vor.u32 %v441, %v442
        %v444 = vshll.u32 920167782, %v429
        %v445 = vshrl.u32 1326507024, %v430
        %v446 = vor.u32 %v444, %v445
        %vm447 = vcmp.lt.s32.totalorder %v428, 1
        %vm448 = vcmp.lt.s32.totalorder %v428, 2
        %vm449 = vcmp.lt.s32.totalorder %v428, 3
        %vm450 = vcmp.lt.s32.totalorder %v428, 4
        %v451 = vsel %vm447, %v431, %v434
        %v452 = vsel %vm450, %v440, 2102212464
        %v453 = vsel %vm449, %v437, %v452
        %v454 = vsel %vm448, %v451, %v453
        %v455 = vsel %vm447, %v434, %v437
        %v456 = vsel %vm450, %v443, 920167782
        %v457 = vsel %vm449, %v440, %v456
        %v458 = vsel %vm448, %v455, %v457
        %v459 = vsel %vm447, %v437, %v440
        %v460 = vsel %vm450, %v446, 1326507024
        %v461 = vsel %vm449, %v443, %v460
        %v462 = vsel %vm448, %v459, %v461
        %v463 = vshll.u32 %v423, 8
        %v464 = vmul.u32.u64.compose %v463, %v462
        %v465 = vextract.low.u32 %v464
        %v466 = vextract.high.u32 %v464
        %v467 = vmul.u32.u64.compose %v463, %v458
        %v468 = vextract.low.u32 %v467
        %v469 = vextract.high.u32 %v467
        %v470 = vmul.u32 %v463, %v454
        %v471 = vadd.s32 %v466, %v468
        %vm472 = vc.u32 %v466, %v468
        %v473 = vadd.s32 %v469, 1
        %v474 = vsel %vm472, %v473, %v469
        %v475 = vadd.s32 %v470, %v474
        %v476 = vadd.s32 %v475, 536870912
        %v477 = vshrl.u32 %v476, 30
        %v478 = vshll.u32 %v477, 30
        %v479 = vsub.s32 %v475, %v478
        %vm480 = vcmp.lt.s32.totalorder %v479, 0
        %v481 = vsub.s32 0, %v479
        %v482 = vsel %vm480, %v481, %v479
        %v483 = vclz %v482
        %v484 = vsub.s32 %v483, 2
        %vm485 = vcmp.gt.s32.totalorder 0, %v484
        %v486 = vsel %vm485, 0, %v484
        %v487 = vsub.s32 32, %v486
        %v488 = vshll.u32 %v479, %v486
        %v489 = vshrl.u32 %v471, %v487
        %v490 = vor.u32 %v488, %v489
        %v491 = vsub.s32 4294967266, %v486
        %v492 = vadd.s32 %v491, 127
        %v493 = vshll.u32 %v492, 23
        %v494 = vor.u32 4788187, %v493
        %v495 = vand.u32 2147483647, %v494
        %v497 = vcvt.s32.f32 %v490
        %v498 = vmul.f32 %v497, %v495
        %v499 = vxor.u32 %v498, 2147483648
        %v500 = vsel %vm417, %v499, %v498
        %v501 = vsub.s32 4, %v477
        %v502 = vsel %vm417, %v501, %v477
        %v503 = vsel %vm416, %v310, %v500
        %v504 = vsel %vm416, 0, %v502
        %v505 = vcosq.f32.pop %v503
        %v506 = vsinq.f32.pop %v503
        %vm507 = vweird.f32 %v310
        %v508 = vadd.s32 %v504, 3
        %v509 = vand.u32 %v508, 3
        %vm510 = vcmp.lt.s32.totalorder %v509, 2
        %vm511 = vcmp.eq.s32.totalorder %v509, 0
        %v512 = vxor.u32 %v506, 2147483648
        %v513 = vsel %vm511, %v505, %v512
        %vm514 = vcmp.eq.s32.totalorder %v509, 2
        %v515 = vxor.u32 %v505, 2147483648
        %v516 = vsel %vm514, %v515, %v506
        %v517 = vsel %vm510, %v513, %v516
        %v518 = vsel %vm507, nan, %v517
        %v519 = vpack.c.bf16 %v518, %v414
        %v520 = vld [vmem:[#allocation2] sm:$0xff]
        %v521 = vld [vmem:[#allocation2 + $0x8] sm:$0xff]
        %v522 = vld [vmem:[#allocation2 + $0x10] sm:$0xff]
        %v523 = vld [vmem:[#allocation2 + $0x18] sm:$0xff]
        %v524 = vld [vmem:[#allocation2 + $0x20] sm:$0xff]
        %v525 = vld [vmem:[#allocation2 + $0x28] sm:$0xff]
        %v526 = vld [vmem:[#allocation2 + $0x30] sm:$0xff]
        %v527 = vld [vmem:[#allocation2 + $0x38] sm:$0xff]
        %v528 = vld [vmem:[#allocation2 + $0x40] sm:$0xff]
        %v529 = vld [vmem:[#allocation2 + $0x48] sm:$0xff]
        %v530 = vld [vmem:[#allocation2 + $0x50] sm:$0xff]
        %v531 = vld [vmem:[#allocation2 + $0x58] sm:$0xff]
        %v532 = vld [vmem:[#allocation2 + $0x60] sm:$0xff]
        %v533 = vld [vmem:[#allocation2 + $0x68] sm:$0xff]
        %v534 = vld [vmem:[#allocation2 + $0x70] sm:$0xff]
        %v535 = vld [vmem:[#allocation2 + $0x78] sm:$0xff]
        %v536 = vld [vmem:[#allocation2 + $0x80] sm:$0xff]
        %v537 = vld [vmem:[#allocation2 + $0x88] sm:$0xff]
        %v538 = vld [vmem:[#allocation2 + $0x90] sm:$0xff]
        %v539 = vld [vmem:[#allocation2 + $0x98] sm:$0xff]
        %v540 = vld [vmem:[#allocation2 + $0xa0] sm:$0xff]
        %v541 = vld [vmem:[#allocation2 + $0xa8] sm:$0xff]
        %v542 = vld [vmem:[#allocation2 + $0xb0] sm:$0xff]
        %v543 = vld [vmem:[#allocation2 + $0xb8] sm:$0xff]
        %v544 = vld [vmem:[#allocation2 + $0xc0] sm:$0xff]
        %v545 = vld [vmem:[#allocation2 + $0xc8] sm:$0xff]
        %v546 = vld [vmem:[#allocation2 + $0xd0] sm:$0xff]
        %v547 = vld [vmem:[#allocation2 + $0xd8] sm:$0xff]
        %v548 = vld [vmem:[#allocation2 + $0xe0] sm:$0xff]
        %v549 = vld [vmem:[#allocation2 + $0xe8] sm:$0xff]
        %v550 = vld [vmem:[#allocation2 + $0xf0] sm:$0xff]
        %v551 = vld [vmem:[#allocation2 + $0xf8] sm:$0xff]
        %v552 = vld [vmem:[%s3] sm:$0xf]
        %v554 = vlaneseq
        %v555 = vshrl.u32 %v554, 7
        %v556 = vsub.s32 0, %v555
        %v557 = vrot.slane %v552, %v556
        %v558 = vlaneseq
        %v559 = vshrl.u32 %v558, 7
        %v560 = vsub.s32 1, %v559
        %v561 = vrot.slane %v552, %v560
        %v562 = vlaneseq
        %v563 = vshrl.u32 %v562, 7
        %v564 = vsub.s32 2, %v563
        %v565 = vrot.slane %v552, %v564
        %v566 = vlaneseq
        %v567 = vshrl.u32 %v566, 7
        %v568 = vsub.s32 3, %v567
        %v569 = vrot.slane %v552, %v568
        %v606 = vunpack.c.l.b16 %v520
        %v607 = vunpack.c.h.b16 %v520
        %v608 = vunpack.c.l.b16 %v521
        %v609 = vunpack.c.h.b16 %v521
        %v610 = vunpack.c.l.b16 %v522
        %v611 = vunpack.c.h.b16 %v522
        %v612 = vunpack.c.l.b16 %v523
        %v613 = vunpack.c.h.b16 %v523
        %v614 = vunpack.c.l.b16 %v524
        %v615 = vunpack.c.h.b16 %v524
        %v616 = vunpack.c.l.b16 %v525
        %v617 = vunpack.c.h.b16 %v525
        %v618 = vunpack.c.l.b16 %v526
        %v619 = vunpack.c.h.b16 %v526
        %v620 = vunpack.c.l.b16 %v527
        %v621 = vunpack.c.h.b16 %v527
        %v622 = vunpack.c.l.b16 %v528
        %v623 = vunpack.c.h.b16 %v528
        %v624 = vunpack.c.l.b16 %v529
        %v625 = vunpack.c.h.b16 %v529
        %v626 = vunpack.c.l.b16 %v530
        %v627 = vunpack.c.h.b16 %v530
        %v628 = vunpack.c.l.b16 %v531
        %v629 = vunpack.c.h.b16 %v531
        %v630 = vunpack.c.l.b16 %v532
        %v631 = vunpack.c.h.b16 %v532
        %v632 = vunpack.c.l.b16 %v533
        %v633 = vunpack.c.h.b16 %v533
        %v634 = vunpack.c.l.b16 %v534
        %v635 = vunpack.c.h.b16 %v534
        %v636 = vunpack.c.l.b16 %v535
        %v637 = vunpack.c.h.b16 %v535
        %v638 = vunpack.c.l.b16 %v536
        %v639 = vunpack.c.h.b16 %v536
        %v640 = vunpack.c.l.b16 %v537
        %v641 = vunpack.c.h.b16 %v537
        %v642 = vunpack.c.l.b16 %v538
        %v643 = vunpack.c.h.b16 %v538
        %v644 = vunpack.c.l.b16 %v539
        %v645 = vunpack.c.h.b16 %v539
        %v646 = vunpack.c.l.b16 %v540
        %v647 = vunpack.c.h.b16 %v540
        %v648 = vunpack.c.l.b16 %v541
        %v649 = vunpack.c.h.b16 %v541
        %v650 = vunpack.c.l.b16 %v542
        %v651 = vunpack.c.h.b16 %v542
        %v652 = vunpack.c.l.b16 %v543
        %v653 = vunpack.c.h.b16 %v543
        %v654 = vunpack.c.l.b16 %v544
        %v655 = vunpack.c.h.b16 %v544
        %v656 = vunpack.c.l.b16 %v545
        %v657 = vunpack.c.h.b16 %v545
        %v658 = vunpack.c.l.b16 %v546
        %v659 = vunpack.c.h.b16 %v546
        %v660 = vunpack.c.l.b16 %v547
        %v661 = vunpack.c.h.b16 %v547
        %v662 = vunpack.c.l.b16 %v548
        %v663 = vunpack.c.h.b16 %v548
        %v664 = vunpack.c.l.b16 %v549
        %v665 = vunpack.c.h.b16 %v549
        %v666 = vunpack.c.l.b16 %v550
        %v667 = vunpack.c.h.b16 %v550
        %v668 = vunpack.c.l.b16 %v551
        %v669 = vunpack.c.h.b16 %v551
        %v670 = vpack.c.b16 %v610, %v606
        %v671 = vpack.c.b16 %v611, %v607
        %v672 = vpack.c.b16 %v612, %v608
        %v673 = vpack.c.b16 %v613, %v609
        %v674 = vpack.c.b16 %v618, %v614
        %v675 = vpack.c.b16 %v619, %v615
        %v676 = vpack.c.b16 %v620, %v616
        %v677 = vpack.c.b16 %v621, %v617
        %v678 = vpack.c.b16 %v626, %v622
        %v679 = vpack.c.b16 %v627, %v623
        %v680 = vpack.c.b16 %v628, %v624
        %v681 = vpack.c.b16 %v629, %v625
        %v682 = vpack.c.b16 %v634, %v630
        %v683 = vpack.c.b16 %v635, %v631
        %v684 = vpack.c.b16 %v636, %v632
        %v685 = vpack.c.b16 %v637, %v633
        %v686 = vpack.c.b16 %v642, %v638
        %v687 = vpack.c.b16 %v643, %v639
        %v688 = vpack.c.b16 %v644, %v640
        %v689 = vpack.c.b16 %v645, %v641
        %v690 = vpack.c.b16 %v650, %v646
        %v691 = vpack.c.b16 %v651, %v647
        %v692 = vpack.c.b16 %v652, %v648
        %v693 = vpack.c.b16 %v653, %v649
        %v694 = vpack.c.b16 %v658, %v654
        %v695 = vpack.c.b16 %v659, %v655
        %v696 = vpack.c.b16 %v660, %v656
        %v697 = vpack.c.b16 %v661, %v657
        %v698 = vpack.c.b16 %v666, %v662
        %v699 = vpack.c.b16 %v667, %v663
        %v700 = vpack.c.b16 %v668, %v664
        %v701 = vpack.c.b16 %v669, %v665
        %734 = vmatprep.subr.bf16.mxu0 %v699
        %735 = vmatpush1.bf16.msra.mxu0 %v698
        %736 = vmatprep.subr.bf16.mxu0 %v695
        %737 = vmatpush1.bf16.msra.mxu0 %v694
        %738 = vmatprep.subr.bf16.mxu0 %v691
        %739 = vmatpush1.bf16.msra.mxu0 %v690
        %740 = vmatprep.subr.bf16.mxu0 %v687
        %741 = vmatpush1.bf16.msra.mxu0 %v686
        %742 = vmatprep.subr.bf16.mxu0 %v683
        %743 = vmatpush1.bf16.msra.mxu0 %v682
        %744 = vmatprep.subr.bf16.mxu0 %v679
        %745 = vmatpush1.bf16.msra.mxu0 %v678
        %746 = vmatprep.subr.bf16.mxu0 %v675
        %747 = vmatpush1.bf16.msra.mxu0 %v674
        %748 = vmatprep.subr.bf16.mxu0 %v671
        %749 = vmatpush1.bf16.msra.mxu0 %v670
        %750 = vmatprep.subr.bf16.mxu0 0
        %751 = vmatpush2.bf16.msra.mxu0 0
        %752 = vmatprep.subr.bf16.mxu0 0
        %753 = vmatpush2.bf16.msra.mxu0 0
        %754 = vmatprep.subr.bf16.mxu0 0
        %755 = vmatpush2.bf16.msra.mxu0 0
        %756 = vmatprep.subr.bf16.mxu0 0
        %757 = vmatpush2.bf16.msra.mxu0 0
        %758 = vmatprep.subr.bf16.mxu0 0
        %759 = vmatpush2.bf16.msra.mxu0 0
        %760 = vmatprep.subr.bf16.mxu0 0
        %761 = vmatpush2.bf16.msra.mxu0 0
        %762 = vmatprep.subr.bf16.mxu0 0
        %763 = vmatpush2.bf16.msra.mxu0 0
        %764 = vmatprep.subr.bf16.mxu0 0
        %765 = vmatpush2.bf16.msra.mxu0 0
        %766 = vmatprep.mubr.bf16.mxu0 0
        %767 = vmatmul.mubr.bf16.gmra.mxu0 %v519
        %v768 = vpop.f32.mrf.mxu0
        %v769 = vadd.f32 %v557, %v768
        %v770 = vpop.f32.mrf.mxu0
        %v771 = vadd.f32 %v561, %v770
        %v772 = vpop.f32.mrf.mxu0
        %v773 = vadd.f32 %v557, %v772
        %v774 = vpop.f32.mrf.mxu0
        %v775 = vadd.f32 %v561, %v774
        %776 = vdwg.mxu0
        %777 = vmatprep.subr.bf16.mxu0 %v701
        %778 = vmatpush1.bf16.msra.mxu0 %v700
        %779 = vmatprep.subr.bf16.mxu0 %v697
        %780 = vmatpush1.bf16.msra.mxu0 %v696
        %781 = vmatprep.subr.bf16.mxu0 %v693
        %782 = vmatpush1.bf16.msra.mxu0 %v692
        %783 = vmatprep.subr.bf16.mxu0 %v689
        %784 = vmatpush1.bf16.msra.mxu0 %v688
        %785 = vmatprep.subr.bf16.mxu0 %v685
        %786 = vmatpush1.bf16.msra.mxu0 %v684
        %787 = vmatprep.subr.bf16.mxu0 %v681
        %788 = vmatpush1.bf16.msra.mxu0 %v680
        %789 = vmatprep.subr.bf16.mxu0 %v677
        %790 = vmatpush1.bf16.msra.mxu0 %v676
        %791 = vmatprep.subr.bf16.mxu0 %v673
        %792 = vmatpush1.bf16.msra.mxu0 %v672
        %793 = vmatprep.subr.bf16.mxu0 0
        %794 = vmatpush2.bf16.msra.mxu0 0
        %795 = vmatprep.subr.bf16.mxu0 0
        %796 = vmatpush2.bf16.msra.mxu0 0
        %797 = vmatprep.subr.bf16.mxu0 0
        %798 = vmatpush2.bf16.msra.mxu0 0
        %799 = vmatprep.subr.bf16.mxu0 0
        %800 = vmatpush2.bf16.msra.mxu0 0
        %801 = vmatprep.subr.bf16.mxu0 0
        %802 = vmatpush2.bf16.msra.mxu0 0
        %803 = vmatprep.subr.bf16.mxu0 0
        %804 = vmatpush2.bf16.msra.mxu0 0
        %805 = vmatprep.subr.bf16.mxu0 0
        %806 = vmatpush2.bf16.msra.mxu0 0
        %807 = vmatprep.subr.bf16.mxu0 0
        %808 = vmatpush2.bf16.msra.mxu0 0
        %809 = vmatprep.mubr.bf16.mxu0 0
        %810 = vmatmul.mubr.bf16.gmra.mxu0 %v519
        %v811 = vpop.f32.mrf.mxu0
        %v812 = vadd.f32 %v565, %v811
        %v813 = vpop.f32.mrf.mxu0
        %v814 = vadd.f32 %v569, %v813
        %v815 = vpop.f32.mrf.mxu0
        %v816 = vadd.f32 %v565, %v815
        %v817 = vpop.f32.mrf.mxu0
        %v818 = vadd.f32 %v569, %v817
        %819 = vdwg.mxu0
        %v820 = vpack.c.bf16 %v773, %v769
        %v821 = vpack.c.bf16 %v775, %v771
        %v822 = vpack.c.bf16 %v816, %v812
        %v823 = vpack.c.bf16 %v818, %v814
        %v824 = vxor.u32 %v820, 2147516416
        %v825 = vxor.u32 %v821, 2147516416
        %v826 = vxor.u32 %v822, 2147516416
        %v827 = vxor.u32 %v823, 2147516416
        %v829 = vmul.bf16 %v824, 1069105081
        %v830 = vpow.bf16.pop %v829
        %v832 = vmul.bf16 %v825, 1069105081
        %v833 = vpow.bf16.pop %v832
        %v835 = vmul.bf16 %v826, 1069105081
        %v836 = vpow.bf16.pop %v835
        %v838 = vmul.bf16 %v827, 1069105081
        %v839 = vpow.bf16.pop %v838
        %v840 = vadd.bf16 %v830, 1065369472
        %v841 = vadd.bf16 %v833, 1065369472
        %v842 = vadd.bf16 %v836, 1065369472
        %v843 = vadd.bf16 %v839, 1065369472
        %v844 = vrcp.bf16.pop %v840
        %v845 = vmul.bf16 1065369472, %v844
        %v846 = vrcp.bf16.pop %v841
        %v847 = vmul.bf16 1065369472, %v846
        %v848 = vrcp.bf16.pop %v842
        %v849 = vmul.bf16 1065369472, %v848
        %v850 = vrcp.bf16.pop %v843
        %v851 = vmul.bf16 1065369472, %v850
        %v852 = vmul.bf16 %v820, %v845
        %v853 = vmul.bf16 %v821, %v847
        %v854 = vmul.bf16 %v822, %v849
        %v855 = vmul.bf16 %v823, %v851
        %v856 = vld [vmem:[#allocation5] sm:$0xf]
        %v857 = vld [vmem:[#allocation5 + $0x4] sm:$0xf]
        %v858 = vld [vmem:[#allocation5 + $0x8] sm:$0xf]
        %v859 = vld [vmem:[#allocation5 + $0xc] sm:$0xf]
        %v860 = vld [vmem:[#allocation5 + $0x10] sm:$0xf]
        %v861 = vld [vmem:[#allocation5 + $0x14] sm:$0xf]
        %v862 = vld [vmem:[#allocation5 + $0x18] sm:$0xf]
        %v863 = vld [vmem:[#allocation5 + $0x1c] sm:$0xf]
        %v864 = vld [vmem:[#allocation5 + $0x20] sm:$0xf]
        %v865 = vld [vmem:[#allocation5 + $0x24] sm:$0xf]
        %v866 = vld [vmem:[#allocation5 + $0x28] sm:$0xf]
        %v867 = vld [vmem:[#allocation5 + $0x2c] sm:$0xf]
        %v868 = vld [vmem:[#allocation5 + $0x30] sm:$0xf]
        %v869 = vld [vmem:[#allocation5 + $0x34] sm:$0xf]
        %v870 = vld [vmem:[#allocation5 + $0x38] sm:$0xf]
        %v871 = vld [vmem:[#allocation5 + $0x3c] sm:$0xf]
        %v872 = vld [vmem:[#allocation5 + $0x40] sm:$0xf]
        %v873 = vld [vmem:[#allocation5 + $0x44] sm:$0xf]
        %v874 = vld [vmem:[#allocation5 + $0x48] sm:$0xf]
        %v875 = vld [vmem:[#allocation5 + $0x4c] sm:$0xf]
        %v876 = vld [vmem:[#allocation5 + $0x50] sm:$0xf]
        %v877 = vld [vmem:[#allocation5 + $0x54] sm:$0xf]
        %v878 = vld [vmem:[#allocation5 + $0x58] sm:$0xf]
        %v879 = vld [vmem:[#allocation5 + $0x5c] sm:$0xf]
        %v880 = vld [vmem:[#allocation5 + $0x60] sm:$0xf]
        %v881 = vld [vmem:[#allocation5 + $0x64] sm:$0xf]
        %v882 = vld [vmem:[#allocation5 + $0x68] sm:$0xf]
        %v883 = vld [vmem:[#allocation5 + $0x6c] sm:$0xf]
        %v884 = vld [vmem:[#allocation5 + $0x70] sm:$0xf]
        %v885 = vld [vmem:[#allocation5 + $0x74] sm:$0xf]
        %v886 = vld [vmem:[#allocation5 + $0x78] sm:$0xf]
        %v887 = vld [vmem:[#allocation5 + $0x7c] sm:$0xf]
        %v888 = vld [vmem:[#allocation5 + $0x80] sm:$0xf]
        %v889 = vld [vmem:[#allocation5 + $0x84] sm:$0xf]
        %v890 = vld [vmem:[#allocation5 + $0x88] sm:$0xf]
        %v891 = vld [vmem:[#allocation5 + $0x8c] sm:$0xf]
        %v892 = vld [vmem:[#allocation5 + $0x90] sm:$0xf]
        %v893 = vld [vmem:[#allocation5 + $0x94] sm:$0xf]
        %v894 = vld [vmem:[#allocation5 + $0x98] sm:$0xf]
        %v895 = vld [vmem:[#allocation5 + $0x9c] sm:$0xf]
        %v896 = vld [vmem:[#allocation5 + $0xa0] sm:$0xf]
        %v897 = vld [vmem:[#allocation5 + $0xa4] sm:$0xf]
        %v898 = vld [vmem:[#allocation5 + $0xa8] sm:$0xf]
        %v899 = vld [vmem:[#allocation5 + $0xac] sm:$0xf]
        %v900 = vld [vmem:[#allocation5 + $0xb0] sm:$0xf]
        %v901 = vld [vmem:[#allocation5 + $0xb4] sm:$0xf]
        %v902 = vld [vmem:[#allocation5 + $0xb8] sm:$0xf]
        %v903 = vld [vmem:[#allocation5 + $0xbc] sm:$0xf]
        %v904 = vld [vmem:[#allocation5 + $0xc0] sm:$0xf]
        %v905 = vld [vmem:[#allocation5 + $0xc4] sm:$0xf]
        %v906 = vld [vmem:[#allocation5 + $0xc8] sm:$0xf]
        %v907 = vld [vmem:[#allocation5 + $0xcc] sm:$0xf]
        %v908 = vld [vmem:[#allocation5 + $0xd0] sm:$0xf]
        %v909 = vld [vmem:[#allocation5 + $0xd4] sm:$0xf]
        %v910 = vld [vmem:[#allocation5 + $0xd8] sm:$0xf]
        %v911 = vld [vmem:[#allocation5 + $0xdc] sm:$0xf]
        %v912 = vld [vmem:[#allocation5 + $0xe0] sm:$0xf]
        %v913 = vld [vmem:[#allocation5 + $0xe4] sm:$0xf]
        %v914 = vld [vmem:[#allocation5 + $0xe8] sm:$0xf]
        %v915 = vld [vmem:[#allocation5 + $0xec] sm:$0xf]
        %v916 = vld [vmem:[#allocation5 + $0xf0] sm:$0xf]
        %v917 = vld [vmem:[#allocation5 + $0xf4] sm:$0xf]
        %v918 = vld [vmem:[#allocation5 + $0xf8] sm:$0xf]
        %v919 = vld [vmem:[#allocation5 + $0xfc] sm:$0xf]
        %v920 = vld [vmem:[%s5] sm:$0x1]
        %v922 = vlaneseq
        %v923 = vshrl.u32 %v922, 7
        %v924 = vsub.s32 0, %v923
        %v925 = vrot.slane %v920, %v924
        %v991 = vunpack.c.l.b16 %v856
        %v992 = vunpack.c.l.b16 %v857
        %v993 = vunpack.c.l.b16 %v858
        %v994 = vunpack.c.l.b16 %v859
        %v995 = vunpack.c.l.b16 %v860
        %v996 = vunpack.c.l.b16 %v861
        %v997 = vunpack.c.l.b16 %v862
        %v998 = vunpack.c.l.b16 %v863
        %v999 = vunpack.c.l.b16 %v864
        %v1000 = vunpack.c.l.b16 %v865
        %v1001 = vunpack.c.l.b16 %v866
        %v1002 = vunpack.c.l.b16 %v867
        %v1003 = vunpack.c.l.b16 %v868
        %v1004 = vunpack.c.l.b16 %v869
        %v1005 = vunpack.c.l.b16 %v870
        %v1006 = vunpack.c.l.b16 %v871
        %v1007 = vunpack.c.l.b16 %v872
        %v1008 = vunpack.c.l.b16 %v873
        %v1009 = vunpack.c.l.b16 %v874
        %v1010 = vunpack.c.l.b16 %v875
        %v1011 = vunpack.c.l.b16 %v876
        %v1012 = vunpack.c.l.b16 %v877
        %v1013 = vunpack.c.l.b16 %v878
        %v1014 = vunpack.c.l.b16 %v879
        %v1015 = vunpack.c.l.b16 %v880
        %v1016 = vunpack.c.l.b16 %v881
        %v1017 = vunpack.c.l.b16 %v882
        %v1018 = vunpack.c.l.b16 %v883
        %v1019 = vunpack.c.l.b16 %v884
        %v1020 = vunpack.c.l.b16 %v885
        %v1021 = vunpack.c.l.b16 %v886
        %v1022 = vunpack.c.l.b16 %v887
        %v1023 = vunpack.c.l.b16 %v888
        %v1024 = vunpack.c.l.b16 %v889
        %v1025 = vunpack.c.l.b16 %v890
        %v1026 = vunpack.c.l.b16 %v891
        %v1027 = vunpack.c.l.b16 %v892
        %v1028 = vunpack.c.l.b16 %v893
        %v1029 = vunpack.c.l.b16 %v894
        %v1030 = vunpack.c.l.b16 %v895
        %v1031 = vunpack.c.l.b16 %v896
        %v1032 = vunpack.c.l.b16 %v897
        %v1033 = vunpack.c.l.b16 %v898
        %v1034 = vunpack.c.l.b16 %v899
        %v1035 = vunpack.c.l.b16 %v900
        %v1036 = vunpack.c.l.b16 %v901
        %v1037 = vunpack.c.l.b16 %v902
        %v1038 = vunpack.c.l.b16 %v903
        %v1039 = vunpack.c.l.b16 %v904
        %v1040 = vunpack.c.l.b16 %v905
        %v1041 = vunpack.c.l.b16 %v906
        %v1042 = vunpack.c.l.b16 %v907
        %v1043 = vunpack.c.l.b16 %v908
        %v1044 = vunpack.c.l.b16 %v909
        %v1045 = vunpack.c.l.b16 %v910
        %v1046 = vunpack.c.l.b16 %v911
        %v1047 = vunpack.c.l.b16 %v912
        %v1048 = vunpack.c.l.b16 %v913
        %v1049 = vunpack.c.l.b16 %v914
        %v1050 = vunpack.c.l.b16 %v915
        %v1051 = vunpack.c.l.b16 %v916
        %v1052 = vunpack.c.l.b16 %v917
        %v1053 = vunpack.c.l.b16 %v918
        %v1054 = vunpack.c.l.b16 %v919
        %v1055 = vpack.c.b16 %v992, %v991
        %v1056 = vpack.c.b16 %v994, %v993
        %v1057 = vpack.c.b16 %v996, %v995
        %v1058 = vpack.c.b16 %v998, %v997
        %v1059 = vpack.c.b16 %v1000, %v999
        %v1060 = vpack.c.b16 %v1002, %v1001
        %v1061 = vpack.c.b16 %v1004, %v1003
        %v1062 = vpack.c.b16 %v1006, %v1005
        %v1063 = vpack.c.b16 %v1008, %v1007
        %v1064 = vpack.c.b16 %v1010, %v1009
        %v1065 = vpack.c.b16 %v1012, %v1011
        %v1066 = vpack.c.b16 %v1014, %v1013
        %v1067 = vpack.c.b16 %v1016, %v1015
        %v1068 = vpack.c.b16 %v1018, %v1017
        %v1069 = vpack.c.b16 %v1020, %v1019
        %v1070 = vpack.c.b16 %v1022, %v1021
        %v1071 = vpack.c.b16 %v1024, %v1023
        %v1072 = vpack.c.b16 %v1026, %v1025
        %v1073 = vpack.c.b16 %v1028, %v1027
        %v1074 = vpack.c.b16 %v1030, %v1029
        %v1075 = vpack.c.b16 %v1032, %v1031
        %v1076 = vpack.c.b16 %v1034, %v1033
        %v1077 = vpack.c.b16 %v1036, %v1035
        %v1078 = vpack.c.b16 %v1038, %v1037
        %v1079 = vpack.c.b16 %v1040, %v1039
        %v1080 = vpack.c.b16 %v1042, %v1041
        %v1081 = vpack.c.b16 %v1044, %v1043
        %v1082 = vpack.c.b16 %v1046, %v1045
        %v1083 = vpack.c.b16 %v1048, %v1047
        %v1084 = vpack.c.b16 %v1050, %v1049
        %v1085 = vpack.c.b16 %v1052, %v1051
        %v1086 = vpack.c.b16 %v1054, %v1053
        %1119 = vmatprep.subr.bf16.mxu0 0
        %1120 = vmatpush1.bf16.msra.mxu0 %v1062
        %1121 = vmatprep.subr.bf16.mxu0 0
        %1122 = vmatpush1.bf16.msra.mxu0 %v1061
        %1123 = vmatprep.subr.bf16.mxu0 0
        %1124 = vmatpush1.bf16.msra.mxu0 %v1060
        %1125 = vmatprep.subr.bf16.mxu0 0
        %1126 = vmatpush1.bf16.msra.mxu0 %v1059
        %1127 = vmatprep.subr.bf16.mxu0 0
        %1128 = vmatpush1.bf16.msra.mxu0 %v1058
        %1129 = vmatprep.subr.bf16.mxu0 0
        %1130 = vmatpush1.bf16.msra.mxu0 %v1057
        %1131 = vmatprep.subr.bf16.mxu0 0
        %1132 = vmatpush1.bf16.msra.mxu0 %v1056
        %1133 = vmatprep.subr.bf16.mxu0 0
        %1134 = vmatpush1.bf16.msra.mxu0 %v1055
        %1135 = vmatprep.subr.bf16.mxu0 0
        %1136 = vmatpush2.bf16.msra.mxu0 %v1070
        %1137 = vmatprep.subr.bf16.mxu0 0
        %1138 = vmatpush2.bf16.msra.mxu0 %v1069
        %1139 = vmatprep.subr.bf16.mxu0 0
        %1140 = vmatpush2.bf16.msra.mxu0 %v1068
        %1141 = vmatprep.subr.bf16.mxu0 0
        %1142 = vmatpush2.bf16.msra.mxu0 %v1067
        %1143 = vmatprep.subr.bf16.mxu0 0
        %1144 = vmatpush2.bf16.msra.mxu0 %v1066
        %1145 = vmatprep.subr.bf16.mxu0 0
        %1146 = vmatpush2.bf16.msra.mxu0 %v1065
        %1147 = vmatprep.subr.bf16.mxu0 0
        %1148 = vmatpush2.bf16.msra.mxu0 %v1064
        %1149 = vmatprep.subr.bf16.mxu0 0
        %1150 = vmatpush2.bf16.msra.mxu0 %v1063
        %1151 = vmatprep.mubr.bf16.mxu0 %v853
        %1152 = vmatmul.mubr.bf16.gmra.mxu0 %v852
        %v1153 = vpop.f32.mrf.mxu0
        %v1154 = vadd.f32 %v925, %v1153
        %v1155 = vpop.f32.mrf.mxu0
        %v1156 = vpop.f32.mrf.mxu0
        %v1157 = vadd.f32 %v925, %v1156
        %v1158 = vpop.f32.mrf.mxu0
        %1159 = vdwg.mxu0
        %1160 = vmatprep.subr.bf16.mxu0 0
        %1161 = vmatpush1.bf16.msra.mxu0 %v1078
        %1162 = vmatprep.subr.bf16.mxu0 0
        %1163 = vmatpush1.bf16.msra.mxu0 %v1077
        %1164 = vmatprep.subr.bf16.mxu0 0
        %1165 = vmatpush1.bf16.msra.mxu0 %v1076
        %1166 = vmatprep.subr.bf16.mxu0 0
        %1167 = vmatpush1.bf16.msra.mxu0 %v1075
        %1168 = vmatprep.subr.bf16.mxu0 0
        %1169 = vmatpush1.bf16.msra.mxu0 %v1074
        %1170 = vmatprep.subr.bf16.mxu0 0
        %1171 = vmatpush1.bf16.msra.mxu0 %v1073
        %1172 = vmatprep.subr.bf16.mxu0 0
        %1173 = vmatpush1.bf16.msra.mxu0 %v1072
        %1174 = vmatprep.subr.bf16.mxu0 0
        %1175 = vmatpush1.bf16.msra.mxu0 %v1071
        %1176 = vmatprep.subr.bf16.mxu0 0
        %1177 = vmatpush2.bf16.msra.mxu0 %v1086
        %1178 = vmatprep.subr.bf16.mxu0 0
        %1179 = vmatpush2.bf16.msra.mxu0 %v1085
        %1180 = vmatprep.subr.bf16.mxu0 0
        %1181 = vmatpush2.bf16.msra.mxu0 %v1084
        %1182 = vmatprep.subr.bf16.mxu0 0
        %1183 = vmatpush2.bf16.msra.mxu0 %v1083
        %1184 = vmatprep.subr.bf16.mxu0 0
        %1185 = vmatpush2.bf16.msra.mxu0 %v1082
        %1186 = vmatprep.subr.bf16.mxu0 0
        %1187 = vmatpush2.bf16.msra.mxu0 %v1081
        %1188 = vmatprep.subr.bf16.mxu0 0
        %1189 = vmatpush2.bf16.msra.mxu0 %v1080
        %1190 = vmatprep.subr.bf16.mxu0 0
        %1191 = vmatpush2.bf16.msra.mxu0 %v1079
        %1192 = vmatprep.mubr.bf16.mxu0 %v855
        %1193 = vmatmul.mubr.bf16.gmra.mxu0 %v854
        %v1194 = vpop.f32.mrf.mxu0
        %v1195 = vadd.f32 %v1154, %v1194
        %v1196 = vpop.f32.mrf.mxu0
        %v1197 = vpop.f32.mrf.mxu0
        %v1198 = vadd.f32 %v1157, %v1197
        %v1199 = vpop.f32.mrf.mxu0
        %1200 = vdwg.mxu0
        %1201 = vst [vmem:[%s275] sm:$0xff] %v1195
        %1202 = vst [vmem:[%s275 + $0x8] sm:$0xff] %v1198
        %s1203 = sand.u32 %s161, 1
        %s1204 = scalar_lea.sflag [#allocation4], %s1203
        %s1205 = sand.u32 %s161, 1
        %s1206 = smul.addr %s1205, 16
        %s1207 = scalar_lea.vmem [#allocation7], %s1206
        // Predicated region
        $region53: #{tpu_custom_call.1} parent=43 // pred_check
          %p1208 = pneg %p171
        $region54: #{tpu_custom_call.1} parent=43 // pred_check_branch
          %1210 = sbr.rel (%p1208) target = $region56
        $region55: #{tpu_custom_call.1} parent=43 // pred_region
          %s1211 = smul.u32 2, %s22
          %s1213 = ssub.s32 256, 256
          %1214 = vsyncadd %s1204, %s1213
          %s1215 = smul.addr %s1211, 128
          %s1216 = scalar_lea.hbm %s6, %s1215
          %s1217 = sshll.u32 %s1207, 4
          %s1218 = int_to_ptr.vmem [resolvable:$true] %s1217
          %1223 = dma.vmem_to_hbm [thread:$0]  %s1218, 256, %s1216, %s1204, 128, 128, 8
        $region56: #{tpu_custom_call.1} parent=43 // pred_fallthru
          _
      $region44: #{tpu_custom_call.1} parent=5 // pred_fallthru
        _
      %p1224 = scmp.le.s32.totalorder 2, %s17
      // Predicated region
      $region57: #{tpu_custom_call.1} parent=5 // pred_check
        %p1225 = pneg %p1224
      $region58: #{tpu_custom_call.1} parent=5 // pred_check_branch
        %1227 = sbr.rel (%p1225) target = $region60
      $region59: #{tpu_custom_call.1} parent=5 // pred_region
        %s1228 = ssub.s32 %s17, 2
        // Predicated region
        $region61: #{tpu_custom_call.1} parent=59 // pred_check
          %p1229 = pneg %p177
        $region62: #{tpu_custom_call.1} parent=59 // pred_check_branch
          %1231 = sbr.rel (%p1229) target = $region64
        $region63: #{tpu_custom_call.1} parent=59 // pred_region
          %s1232 = sand.u32 %s162, 1
          %s1233 = scalar_lea.sflag [#allocation4], %s1232
          %s1234 = sand.u32 %s162, 1
          %s1235 = smul.addr %s1234, 16
          %s1236 = scalar_lea.vmem [#allocation7], %s1235
          %1237 = dma.done %s1233, 256
        $region64: #{tpu_custom_call.1} parent=59 // pred_fallthru
          _
      $region60: #{tpu_custom_call.1} parent=5 // pred_fallthru
        _
    $region6: #{tpu_custom_call.1} parent=1 // loop_footer
      %s21 = sadd.s32 1, %s17
    $region7: #{tpu_custom_call.1} parent=1 // loop_footer_branch
      %16 = sbr.rel target = $region3
    $region8: #{tpu_custom_call.1} parent=1 // loop_exit
      _
    %1238 = vsyncpa [#allocation3], 1
    %s1239 = scalar_lea.sflag [#allocation3], 1
    %1240 = vsyncpa %s1239, 1
    %1241 = vsyncpa [#allocation6], 1
    %1242 = vsyncpa [#allocation4], 1
    %s1243 = scalar_lea.sflag [#allocation4], 1
    %1244 = vsyncpa %s1243, 1

// kernel: tpu_custom_call.1
$region0: #{tpu_custom_call.1}
  #allocation0 [shape = 'u32[]', space=smem, size = 0x4, offset = 0x4, fixed_abs, tag = 'smem constant byte address 0x4 - core index']
  #allocation1 [shape = 'u32[144,128]{1,0:T(1,128)}', space=vmem, size = 0x12000, scoped, tag = 'internal scratch']
  %s0 = inlined_call_operand.vmem [shape: f32[32,1], index: 0, kind: input, shape index: {}]
  %s1 = inlined_call_operand.vmem [shape: f32[2,128], index: 1, kind: input, shape index: {}]
  %s2 = inlined_call_operand.hbm [shape: bf16[128,512], index: 2, kind: input, shape index: {}]
  %s3 = inlined_call_operand.vmem [shape: f32[1,512], index: 3, kind: input, shape index: {}]
  %s4 = inlined_call_operand.hbm [shape: bf16[512,128], index: 4, kind: input, shape index: {}]
  %s5 = inlined_call_operand.vmem [shape: f32[1,128], index: 5, kind: input, shape index: {}]
  %s6 = inlined_call_operand.hbm [shape: f32[32,128], index: 6, kind: output, shape index: {}]
  %s7 = sld [smem:[#allocation0]]
  $region65: #{tpu_custom_call.1} parent=0
    _
  %s9 = ssub.s32 1, %s7
  %s10 = scalar_select 0, %s9, %s7
  $region1: #{tpu_custom_call.1} parent=0
    #allocation2 [shape = 'u8[131072]{0}', space=vmem, size = 0x20000, scoped, tag = 'input window, operand 2, single buffered']
    #allocation3 [shape = 's32[2]{0}', space=sflag, size = 0x8, scoped, tag = 'scoped memory for tpu_custom_call.1']
    #allocation4 [shape = 's32[2]{0}', space=sflag, size = 0x8, scoped, tag = 'scoped memory for tpu_custom_call.1']
    #allocation5 [shape = 'u8[131072]{0}', space=vmem, size = 0x20000, scoped, tag = 'input window, operand 4, single buffered']
    #allocation6 [shape = 's32[1]{0}', space=sflag, size = 0x4, scoped, tag = 'scoped memory for tpu_custom_call.1']
    #allocation7 [shape = 'u8[16384]{0}', space=vmem, size = 0x4000, scoped, tag = 'output window, operand 0']
    %11 = vsyncpa [#allocation3], 0
    %12 = vsyncpa [#allocation6], 0
    %13 = vsyncpa [#allocation4], 0
    %s14 = scalar_lea.sflag [#allocation4], 1
    %15 = vsyncpa %s14, 0
    loop: start=0, step=1, limit=4
    $region2: #{tpu_custom_call.1} parent=1 // loop_pre_header
      _
    $region3: #{tpu_custom_call.1} parent=1 // loop_header
      %s17 = sphi 0, %s21
      %p18 = scmp.ge.s32.totalorder %s17, 4
      %s27 = sphi 0, %s29
      %s30 = sphi 0, %s27
      %s31 = sphi 0, %s30
      %s47 = sphi 0, %s31
      %s51 = sphi 0, %s51
      %s53 = sphi 0, %s51
      %s54 = sphi 0, %s53
      %s68 = sphi 0, %s54
      %s72 = sphi 0, %s72
      %s74 = sphi 0, %s72
      %s75 = sphi 0, %s74
      %s89 = sphi 0, %s75
      %s93 = sphi 0, %s93
      %s95 = sphi 0, %s93
      %s96 = sphi 0, %s95
      %s110 = sphi 0, %s96
      %s114 = sphi 0, %s114
      %s116 = sphi 0, %s114
      %s117 = sphi 0, %s116
      %s131 = sphi 0, %s117
      %s135 = sphi 0, %s135
      %s137 = sphi 0, %s135
      %s138 = sphi 0, %s137
      %s152 = sphi 0, %s138
      %s158 = sphi 0, %s160
      %s161 = sphi 0, %s158
      %s162 = sphi 0, %s161
      %s178 = sphi 0, %s162
    $region4: #{tpu_custom_call.1} parent=1 // loop_header_branch
      %20 = sbr.rel (%p18) target = $region8
    $region5: #{tpu_custom_call.1} parent=1 // loop_body
      %s22 = ssub.s32 %s17, 1
      %s23 = ssub.s32 %s17, 2
      %s24 = sadd.s32 %s17, 1
      %s25 = ssub.s32 %s17, %s24
      %p26 = scmp.eq.s32.totalorder %s25, 0
      %s28 = sadd.s32 %s27, 1
      %s29 = scalar_select %p26, %s27, %s28
      %p32 = pneg %p26
      %p33 = scmp.eq.s32.totalorder %s17, 1
      %p34 = por %p32, %p33
      %p35 = scmp.ne.s32.totalorder %s27, %s30
      %p36 = scmp.eq.s32.totalorder %s17, 0
      %p37 = por %p35, %p36
      %p38 = scmp.ne.s32.totalorder %s27, %s30
      %p39 = scmp.eq.s32.totalorder %s22, 1
      %p40 = por %p38, %p39
      %p41 = scmp.ne.s32.totalorder %s30, %s31
      %p42 = scmp.eq.s32.totalorder %s22, 0
      %p43 = por %p41, %p42
      %p44 = scmp.ne.s32.totalorder %s30, %s31
      %p45 = scmp.eq.s32.totalorder %s23, 1
      %p46 = por %p44, %p45
      %p48 = scmp.ne.s32.totalorder %s31, %s47
      %p49 = scmp.eq.s32.totalorder %s23, 0
      %p50 = por %p48, %p49
      %s52 = sadd.s32 %s51, 1
      %p55 = scmp.eq.s32.totalorder %s17, 1
      %p56 = scmp.ne.s32.totalorder %s51, %s53
      %p57 = scmp.eq.s32.totalorder %s17, 0
      %p58 = por %p56, %p57
      %p59 = scmp.ne.s32.totalorder %s51, %s53
      %p60 = scmp.eq.s32.totalorder %s22, 1
      %p61 = por %p59, %p60
      %p62 = scmp.ne.s32.totalorder %s53, %s54
      %p63 = scmp.eq.s32.totalorder %s22, 0
      %p64 = por %p62, %p63
      %p65 = scmp.ne.s32.totalorder %s53, %s54
      %p66 = scmp.eq.s32.totalorder %s23, 1
      %p67 = por %p65, %p66
      %p69 = scmp.ne.s32.totalorder %s54, %s68
      %p70 = scmp.eq.s32.totalorder %s23, 0
      %p71 = por %p69, %p70
      %s73 = sadd.s32 %s72, 1
      %p76 = scmp.eq.s32.totalorder %s17, 1
      %p77 = scmp.ne.s32.totalorder %s72, %s74
      %p78 = scmp.eq.s32.totalorder %s17, 0
      %p79 = por %p77, %p78
      %p80 = scmp.ne.s32.totalorder %s72, %s74
      %p81 = scmp.eq.s32.totalorder %s22, 1
      %p82 = por %p80, %p81
      %p83 = scmp.ne.s32.totalorder %s74, %s75
      %p84 = scmp.eq.s32.totalorder %s22, 0
      %p85 = por %p83, %p84
      %p86 = scmp.ne.s32.totalorder %s74, %s75
      %p87 = scmp.eq.s32.totalorder %s23, 1
      %p88 = por %p86, %p87
      %p90 = scmp.ne.s32.totalorder %s75, %s89
      %p91 = scmp.eq.s32.totalorder %s23, 0
      %p92 = por %p90, %p91
      %s94 = sadd.s32 %s93, 1
      %p97 = scmp.eq.s32.totalorder %s17, 1
      %p98 = scmp.ne.s32.totalorder %s93, %s95
      %p99 = scmp.eq.s32.totalorder %s17, 0
      %p100 = por %p98, %p99
      %p101 = scmp.ne.s32.totalorder %s93, %s95
      %p102 = scmp.eq.s32.totalorder %s22, 1
      %p103 = por %p101, %p102
      %p104 = scmp.ne.s32.totalorder %s95, %s96
      %p105 = scmp.eq.s32.totalorder %s22, 0
      %p106 = por %p104, %p105
      %p107 = scmp.ne.s32.totalorder %s95, %s96
      %p108 = scmp.eq.s32.totalorder %s23, 1
      %p109 = por %p107, %p108
      %p111 = scmp.ne.s32.totalorder %s96, %s110
      %p112 = scmp.eq.s32.totalorder %s23, 0
      %p113 = por %p111, %p112
      %s115 = sadd.s32 %s114, 1
      %p118 = scmp.eq.s32.totalorder %s17, 1
      %p119 = scmp.ne.s32.totalorder %s114, %s116
      %p120 = scmp.eq.s32.totalorder %s17, 0
      %p121 = por %p119, %p120
      %p122 = scmp.ne.s32.totalorder %s114, %s116
      %p123 = scmp.eq.s32.totalorder %s22, 1
      %p124 = por %p122, %p123
      %p125 = scmp.ne.s32.totalorder %s116, %s117
      %p126 = scmp.eq.s32.totalorder %s22, 0
      %p127 = por %p125, %p126
      %p128 = scmp.ne.s32.totalorder %s116, %s117
      %p129 = scmp.eq.s32.totalorder %s23, 1
      %p130 = por %p128, %p129
      %p132 = scmp.ne.s32.totalorder %s117, %s131
      %p133 = scmp.eq.s32.totalorder %s23, 0
      %p134 = por %p132, %p133
      %s136 = sadd.s32 %s135, 1
      %p139 = scmp.eq.s32.totalorder %s17, 1
      %p140 = scmp.ne.s32.totalorder %s135, %s137
      %p141 = scmp.eq.s32.totalorder %s17, 0
      %p142 = por %p140, %p141
      %p143 = scmp.ne.s32.totalorder %s135, %s137
      %p144 = scmp.eq.s32.totalorder %s22, 1
      %p145 = por %p143, %p144
      %p146 = scmp.ne.s32.totalorder %s137, %s138
      %p147 = scmp.eq.s32.totalorder %s22, 0
      %p148 = por %p146, %p147
      %p149 = scmp.ne.s32.totalorder %s137, %s138
      %p150 = scmp.eq.s32.totalorder %s23, 1
      %p151 = por %p149, %p150
      %p153 = scmp.ne.s32.totalorder %s138, %s152
      %p154 = scmp.eq.s32.totalorder %s23, 0
      %p155 = por %p153, %p154
      %s156 = ssub.s32 %s17, %s24
      %p157 = scmp.eq.s32.totalorder %s156, 0
      %s159 = sadd.s32 %s158, 1
      %s160 = scalar_select %p157, %s158, %s159
      %p163 = pneg %p157
      %p164 = scmp.eq.s32.totalorder %s17, 1
      %p165 = por %p163, %p164
      %p166 = scmp.ne.s32.totalorder %s158, %s161
      %p167 = scmp.eq.s32.totalorder %s17, 0
      %p168 = por %p166, %p167
      %p169 = scmp.ne.s32.totalorder %s158, %s161
      %p170 = scmp.eq.s32.totalorder %s22, 1
      %p171 = por %p169, %p170
      %p172 = scmp.ne.s32.totalorder %s161, %s162
      %p173 = scmp.eq.s32.totalorder %s22, 0
      %p174 = por %p172, %p173
      %p175 = scmp.ne.s32.totalorder %s161, %s162
      %p176 = scmp.eq.s32.totalorder %s23, 1
      %p177 = por %p175, %p176
      %p179 = scmp.ne.s32.totalorder %s162, %s178
      %p180 = scmp.eq.s32.totalorder %s23, 0
      %p181 = por %p179, %p180
      %p182 = scmp.le.s32.totalorder 1, %s17
      %p183 = scmp.lt.s32.totalorder %s17, 3
      %p184 = pnand %p182, %p183
      %p185 = pneg %p184
      // Predicated region
      $region9: #{tpu_custom_call.1} parent=5 // pred_check
        _
      $region10: #{tpu_custom_call.1} parent=5 // pred_check_branch
        %187 = sbr.rel (%p184) target = $region12
      $region11: #{tpu_custom_call.1} parent=5 // pred_region
        %s188 = ssub.s32 %s17, 1
        // Predicated region
        $region13: #{tpu_custom_call.1} parent=11 // pred_check
          %p189 = pneg %p64
        $region14: #{tpu_custom_call.1} parent=11 // pred_check_branch
          %191 = sbr.rel (%p189) target = $region16
        $region15: #{tpu_custom_call.1} parent=11 // pred_region
          _
        $region16: #{tpu_custom_call.1} parent=11 // pred_fallthru
          _
        // Predicated region
        $region17: #{tpu_custom_call.1} parent=11 // pred_check
          %p192 = pneg %p85
        $region18: #{tpu_custom_call.1} parent=11 // pred_check_branch
          %194 = sbr.rel (%p192) target = $region20
        $region19: #{tpu_custom_call.1} parent=11 // pred_region
          %s196 = ssub.s32 4096, 4096
          %197 = vsyncadd [#allocation3], %s196
          %s198 = sshll.u32 [#allocation2], 4
          %s199 = int_to_ptr.vmem [resolvable:$true] %s198
          %204 = dma.hbm_to_vmem [thread:$0]  %s2, 4096, %s199, [#allocation3], 256, 256, 16
        $region20: #{tpu_custom_call.1} parent=11 // pred_fallthru
          _
        // Predicated region
        $region21: #{tpu_custom_call.1} parent=11 // pred_check
          %p205 = pneg %p106
        $region22: #{tpu_custom_call.1} parent=11 // pred_check_branch
          %207 = sbr.rel (%p205) target = $region24
        $region23: #{tpu_custom_call.1} parent=11 // pred_region
          _
        $region24: #{tpu_custom_call.1} parent=11 // pred_fallthru
          _
        // Predicated region
        $region25: #{tpu_custom_call.1} parent=11 // pred_check
          %p208 = pneg %p127
        $region26: #{tpu_custom_call.1} parent=11 // pred_check_branch
          %210 = sbr.rel (%p208) target = $region28
        $region27: #{tpu_custom_call.1} parent=11 // pred_region
          %s212 = ssub.s32 4096, 4096
          %213 = vsyncadd [#allocation6], %s212
          %s214 = sshll.u32 [#allocation5], 4
          %s215 = int_to_ptr.vmem [resolvable:$true] %s214
          %220 = dma.hbm_to_vmem [thread:$0]  %s4, 4096, %s215, [#allocation6], 64, 64, 4
        $region28: #{tpu_custom_call.1} parent=11 // pred_fallthru
          _
        // Predicated region
        $region29: #{tpu_custom_call.1} parent=11 // pred_check
          %p221 = pneg %p148
        $region30: #{tpu_custom_call.1} parent=11 // pred_check_branch
          %223 = sbr.rel (%p221) target = $region32
        $region31: #{tpu_custom_call.1} parent=11 // pred_region
          _
        $region32: #{tpu_custom_call.1} parent=11 // pred_fallthru
          _
      $region12: #{tpu_custom_call.1} parent=5 // pred_fallthru
        _
      %p224 = scmp.lt.s32.totalorder %s17, 2
      // Predicated region
      $region33: #{tpu_custom_call.1} parent=5 // pred_check
        %p225 = pneg %p224
      $region34: #{tpu_custom_call.1} parent=5 // pred_check_branch
        %227 = sbr.rel (%p225) target = $region36
      $region35: #{tpu_custom_call.1} parent=5 // pred_region
        // Predicated region
        $region37: #{tpu_custom_call.1} parent=35 // pred_check
          %p228 = pneg %p37
        $region38: #{tpu_custom_call.1} parent=35 // pred_check_branch
          %230 = sbr.rel (%p228) target = $region40
        $region39: #{tpu_custom_call.1} parent=35 // pred_region
          %s231 = smul.u32 2, %s17
          %p232 = scmp.lt.s32.totalorder %s231, 3
          %s233 = scalar_select %p232, %s231, 3
          %s234 = smul.addr %s233, 8
          %s235 = scalar_lea.vmem %s0, %s234
          %s236 = smul.u32 2, %s17
        $region40: #{tpu_custom_call.1} parent=35 // pred_fallthru
          _
      $region36: #{tpu_custom_call.1} parent=5 // pred_fallthru
        _
      %p237 = scmp.le.s32.totalorder 1, %s17
      %p238 = scmp.lt.s32.totalorder %s17, 3
      %p239 = pnand %p237, %p238
      %p240 = pneg %p239
      // Predicated region
      $region41: #{tpu_custom_call.1} parent=5 // pred_check
        _
      $region42: #{tpu_custom_call.1} parent=5 // pred_check_branch
        %242 = sbr.rel (%p239) target = $region44
      $region43: #{tpu_custom_call.1} parent=5 // pred_region
        %s243 = ssub.s32 %s17, 1
        // Predicated region
        $region45: #{tpu_custom_call.1} parent=43 // pred_check
          %p244 = pneg %p85
        $region46: #{tpu_custom_call.1} parent=43 // pred_check_branch
          %246 = sbr.rel (%p244) target = $region48
        $region47: #{tpu_custom_call.1} parent=43 // pred_region
          %247 = dma.done [#allocation3], 4096
        $region48: #{tpu_custom_call.1} parent=43 // pred_fallthru
          _
        // Predicated region
        $region49: #{tpu_custom_call.1} parent=43 // pred_check
          %p248 = pneg %p127
        $region50: #{tpu_custom_call.1} parent=43 // pred_check_branch
          %250 = sbr.rel (%p248) target = $region52
        $region51: #{tpu_custom_call.1} parent=43 // pred_region
          %251 = dma.done [#allocation6], 4096
        $region52: #{tpu_custom_call.1} parent=43 // pred_fallthru
          _
        %s252 = smul.u32 2, %s22
        %p253 = scmp.lt.s32.totalorder %s252, 3
        %s254 = scalar_select %p253, %s252, 3
        %s255 = smul.addr %s254, 8
        %s256 = scalar_lea.vmem %s0, %s255
        %p257 = pneg %p43
        %p258 = pneg %p40
        %p259 = pneg %p64
        %p260 = pneg %p61
        %p261 = pneg %p85
        %p262 = pneg %p82
        %p263 = pneg %p106
        %p264 = pneg %p103
        %p265 = pneg %p127
        %p266 = pneg %p124
        %p267 = pneg %p148
        %p268 = pneg %p145
        %p269 = pneg %p174
        %p270 = pneg %p171
        %s271 = sand.u32 %s161, 1
        %s272 = scalar_lea.sflag [#allocation4], %s271
        %s273 = sand.u32 %s161, 1
        %s274 = smul.addr %s273, 16
        %s275 = scalar_lea.vmem [#allocation7], %s274
        %s276 = smul.u32 2, %s22
        %p277 = scmp.lt.s32.totalorder %s276, 3
        %s278 = scalar_select %p277, %s276, 3
        %s279 = smul.addr %s278, 8
        %s280 = scalar_lea.vmem %s0, %s279
        %s281 = smul.u32 2, %s22
        %s282 = smul.u32 2, %s22
        %v285 = vld [vmem:[%s280] sm:$0xff]
        %v286 = vld [vmem:[%s280 + $0x8] sm:$0xff]
        %v287 = vld [vmem:[%s1] sm:$0x1]
        %v288 = vld [vmem:[%s1 + $0x1] sm:$0x1]
        %290 = vset.pattern.permute.xlu0 0
        %291 = vperm.xlu0 %290, %v285
        %v292 = vpop.permute.xlu0 %291
        %295 = vset.pattern.permute.xlu0 0
        %296 = vperm.xlu0 %295, %v286
        %v297 = vpop.permute.xlu0 %296
        %v299 = vlaneseq
        %v300 = vshrl.u32 %v299, 7
        %v301 = vsub.s32 0, %v300
        %v302 = vrot.slane %v287, %v301
        %v303 = vmul.f32 %v292, %v302
        %v304 = vmul.f32 %v297, %v302
        %v305 = vlaneseq
        %v306 = vshrl.u32 %v305, 7
        %v307 = vsub.s32 0, %v306
        %v308 = vrot.slane %v288, %v307
        %v309 = vadd.f32 %v303, %v308
        %v310 = vadd.f32 %v304, %v308
        %v311 = vand.u32 2147483647, %v309
        %vm312 = vcmp.le.f32.partialorder %v311, 0.7853982
        %vm313 = vcmp.lt.s32.totalorder %v309, 0
        %v314 = vand.u32 %v309, 2139095040
        %v315 = vshrl.u32 %v314, 23
        %v316 = vsub.s32 %v315, 127
        %v317 = vand.u32 2147483647, %v309
        %v318 = vand.u32 %v317, 8388607
        %v319 = vor.u32 %v318, 8388608
        %v320 = vsub.s32 0, %v319
        %v321 = vadd.s32 %v316, 1
        %vm322 = vcmp.gt.s32.totalorder %v321, 0
        %v323 = vsel %vm322, %v321, 0
        %v324 = vshrl.u32 %v323, 5
        %v325 = vand.u32 %v323, 31
        %v326 = vsub.s32 32, %v325
        %v327 = vshrl.u32 683565275, %v326
        %v328 = vshll.u32 683565275, %v325
        %v329 = vshrl.u32 2475754826, %v326
        %v330 = vor.u32 %v328, %v329
        %v331 = vshll.u32 2475754826, %v325
        %v332 = vshrl.u32 2131351028, %v326
        %v333 = vor.u32 %v331, %v332
        %v334 = vshll.u32 2131351028, %v325
        %v335 = vshrl.u32 2102212464, %v326
        %v336 = vor.u32 %v334, %v335
        %v337 = vshll.u32 2102212464, %v325
        %v338 = vshrl.u32 920167782, %v326
        %v339 = vor.u32 %v337, %v338
        %v340 = vshll.u32 920167782, %v325
        %v341 = vshrl.u32 1326507024, %v326
        %v342 = vor.u32 %v340, %v341
        %vm343 = vcmp.lt.s32.totalorder %v324, 1
        %vm344 = vcmp.lt.s32.totalorder %v324, 2
        %vm345 = vcmp.lt.s32.totalorder %v324, 3
        %vm346 = vcmp.lt.s32.totalorder %v324, 4
        %v347 = vsel %vm343, %v327, %v330
        %v348 = vsel %vm346, %v336, 2102212464
        %v349 = vsel %vm345, %v333, %v348
        %v350 = vsel %vm344, %v347, %v349
        %v351 = vsel %vm343, %v330, %v333
        %v352 = vsel %vm346, %v339, 920167782
        %v353 = vsel %vm345, %v336, %v352
        %v354 = vsel %vm344, %v351, %v353
        %v355 = vsel %vm343, %v333, %v336
        %v356 = vsel %vm346, %v342, 1326507024
        %v357 = vsel %vm345, %v339, %v356
        %v358 = vsel %vm344, %v355, %v357
        %v359 = vshll.u32 %v319, 8
        %v360 = vmul.u32.u64.compose %v359, %v358
        %v361 = vextract.low.u32 %v360
        %v362 = vextract.high.u32 %v360
        %v363 = vmul.u32.u64.compose %v359, %v354
        %v364 = vextract.low.u32 %v363
        %v365 = vextract.high.u32 %v363
        %v366 = vmul.u32 %v359, %v350
        %v367 = vadd.s32 %v362, %v364
        %vm368 = vc.u32 %v362, %v364
        %v369 = vadd.s32 %v365, 1
        %v370 = vsel %vm368, %v369, %v365
        %v371 = vadd.s32 %v366, %v370
        %v372 = vadd.s32 %v371, 536870912
        %v373 = vshrl.u32 %v372, 30
        %v374 = vshll.u32 %v373, 30
        %v375 = vsub.s32 %v371, %v374
        %vm376 = vcmp.lt.s32.totalorder %v375, 0
        %v377 = vsub.s32 0, %v375
        %v378 = vsel %vm376, %v377, %v375
        %v379 = vclz %v378
        %v380 = vsub.s32 %v379, 2
        %vm381 = vcmp.gt.s32.totalorder 0, %v380
        %v382 = vsel %vm381, 0, %v380
        %v383 = vsub.s32 32, %v382
        %v384 = vshll.u32 %v375, %v382
        %v385 = vshrl.u32 %v367, %v383
        %v386 = vor.u32 %v384, %v385
        %v387 = vsub.s32 4294967266, %v382
        %v388 = vadd.s32 %v387, 127
        %v389 = vshll.u32 %v388, 23
        %v390 = vor.u32 4788187, %v389
        %v391 = vand.u32 2147483647, %v390
        %v393 = vcvt.s32.f32 %v386
        %v394 = vmul.f32 %v393, %v391
        %v395 = vxor.u32 %v394, 2147483648
        %v396 = vsel %vm313, %v395, %v394
        %v397 = vsub.s32 4, %v373
        %v398 = vsel %vm313, %v397, %v373
        %v399 = vsel %vm312, %v309, %v396
        %v400 = vsel %vm312, 0, %v398
        %v401 = vcosq.f32.pop %v399
        %v402 = vsinq.f32.pop %v399
        %vm403 = vweird.f32 %v309
        %v404 = vadd.s32 %v400, 3
        %v405 = vand.u32 %v404, 3
        %vm406 = vcmp.lt.s32.totalorder %v405, 2
        %vm407 = vcmp.eq.s32.totalorder %v405, 0
        %v408 = vxor.u32 %v402, 2147483648
        %v409 = vsel %vm407, %v401, %v408
        %vm410 = vcmp.eq.s32.totalorder %v405, 2
        %v411 = vxor.u32 %v401, 2147483648
        %v412 = vsel %vm410, %v411, %v402
        %v413 = vsel %vm406, %v409, %v412
        %v414 = vsel %vm403, nan, %v413
        %v415 = vand.u32 2147483647, %v310
        %vm416 = vcmp.le.f32.partialorder %v415, 0.7853982
        %vm417 = vcmp.lt.s32.totalorder %v310, 0
        %v418 = vand.u32 %v310, 2139095040
        %v419 = vshrl.u32 %v418, 23
        %v420 = vsub.s32 %v419, 127
        %v421 = vand.u32 2147483647, %v310
        %v422 = vand.u32 %v421, 8388607
        %v423 = vor.u32 %v422, 8388608
        %v424 = vsub.s32 0, %v423
        %v425 = vadd.s32 %v420, 1
        %vm426 = vcmp.gt.s32.totalorder %v425, 0
        %v427 = vsel %vm426, %v425, 0
        %v428 = vshrl.u32 %v427, 5
        %v429 = vand.u32 %v427, 31
        %v430 = vsub.s32 32, %v429
        %v431 = vshrl.u32 683565275, %v430
        %v432 = vshll.u32 683565275, %v429
        %v433 = vshrl.u32 2475754826, %v430
        %v434 = vor.u32 %v432, %v433
        %v435 = vshll.u32 2475754826, %v429
        %v436 = vshrl.u32 2131351028, %v430
        %v437 = vor.u32 %v435, %v436
        %v438 = vshll.u32 2131351028, %v429
        %v439 = vshrl.u32 2102212464, %v430
        %v440 = vor.u32 %v438, %v439
        %v441 = vshll.u32 2102212464, %v429
        %v442 = vshrl.u32 920167782, %v430
        %v443 = vor.u32 %v441, %v442
        %v444 = vshll.u32 920167782, %v429
        %v445 = vshrl.u32 1326507024, %v430
        %v446 = vor.u32 %v444, %v445
        %vm447 = vcmp.lt.s32.totalorder %v428, 1
        %vm448 = vcmp.lt.s32.totalorder %v428, 2
        %vm449 = vcmp.lt.s32.totalorder %v428, 3
        %vm450 = vcmp.lt.s32.totalorder %v428, 4
        %v451 = vsel %vm447, %v431, %v434
        %v452 = vsel %vm450, %v440, 2102212464
        %v453 = vsel %vm449, %v437, %v452
        %v454 = vsel %vm448, %v451, %v453
        %v455 = vsel %vm447, %v434, %v437
        %v456 = vsel %vm450, %v443, 920167782
        %v457 = vsel %vm449, %v440, %v456
        %v458 = vsel %vm448, %v455, %v457
        %v459 = vsel %vm447, %v437, %v440
        %v460 = vsel %vm450, %v446, 1326507024
        %v461 = vsel %vm449, %v443, %v460
        %v462 = vsel %vm448, %v459, %v461
        %v463 = vshll.u32 %v423, 8
        %v464 = vmul.u32.u64.compose %v463, %v462
        %v465 = vextract.low.u32 %v464
        %v466 = vextract.high.u32 %v464
        %v467 = vmul.u32.u64.compose %v463, %v458
        %v468 = vextract.low.u32 %v467
        %v469 = vextract.high.u32 %v467
        %v470 = vmul.u32 %v463, %v454
        %v471 = vadd.s32 %v466, %v468
        %vm472 = vc.u32 %v466, %v468
        %v473 = vadd.s32 %v469, 1
        %v474 = vsel %vm472, %v473, %v469
        %v475 = vadd.s32 %v470, %v474
        %v476 = vadd.s32 %v475, 536870912
        %v477 = vshrl.u32 %v476, 30
        %v478 = vshll.u32 %v477, 30
        %v479 = vsub.s32 %v475, %v478
        %vm480 = vcmp.lt.s32.totalorder %v479, 0
        %v481 = vsub.s32 0, %v479
        %v482 = vsel %vm480, %v481, %v479
        %v483 = vclz %v482
        %v484 = vsub.s32 %v483, 2
        %vm485 = vcmp.gt.s32.totalorder 0, %v484
        %v486 = vsel %vm485, 0, %v484
        %v487 = vsub.s32 32, %v486
        %v488 = vshll.u32 %v479, %v486
        %v489 = vshrl.u32 %v471, %v487
        %v490 = vor.u32 %v488, %v489
        %v491 = vsub.s32 4294967266, %v486
        %v492 = vadd.s32 %v491, 127
        %v493 = vshll.u32 %v492, 23
        %v494 = vor.u32 4788187, %v493
        %v495 = vand.u32 2147483647, %v494
        %v497 = vcvt.s32.f32 %v490
        %v498 = vmul.f32 %v497, %v495
        %v499 = vxor.u32 %v498, 2147483648
        %v500 = vsel %vm417, %v499, %v498
        %v501 = vsub.s32 4, %v477
        %v502 = vsel %vm417, %v501, %v477
        %v503 = vsel %vm416, %v310, %v500
        %v504 = vsel %vm416, 0, %v502
        %v505 = vcosq.f32.pop %v503
        %v506 = vsinq.f32.pop %v503
        %vm507 = vweird.f32 %v310
        %v508 = vadd.s32 %v504, 3
        %v509 = vand.u32 %v508, 3
        %vm510 = vcmp.lt.s32.totalorder %v509, 2
        %vm511 = vcmp.eq.s32.totalorder %v509, 0
        %v512 = vxor.u32 %v506, 2147483648
        %v513 = vsel %vm511, %v505, %v512
        %vm514 = vcmp.eq.s32.totalorder %v509, 2
        %v515 = vxor.u32 %v505, 2147483648
        %v516 = vsel %vm514, %v515, %v506
        %v517 = vsel %vm510, %v513, %v516
        %v518 = vsel %vm507, nan, %v517
        %v519 = vpack.c.bf16 %v518, %v414
        %v520 = vld [vmem:[#allocation2] sm:$0xff]
        %v521 = vld [vmem:[#allocation2 + $0x8] sm:$0xff]
        %v522 = vld [vmem:[#allocation2 + $0x10] sm:$0xff]
        %v523 = vld [vmem:[#allocation2 + $0x18] sm:$0xff]
        %v524 = vld [vmem:[#allocation2 + $0x20] sm:$0xff]
        %v525 = vld [vmem:[#allocation2 + $0x28] sm:$0xff]
        %v526 = vld [vmem:[#allocation2 + $0x30] sm:$0xff]
        %v527 = vld [vmem:[#allocation2 + $0x38] sm:$0xff]
        %v528 = vld [vmem:[#allocation2 + $0x40] sm:$0xff]
        %v529 = vld [vmem:[#allocation2 + $0x48] sm:$0xff]
        %v530 = vld [vmem:[#allocation2 + $0x50] sm:$0xff]
        %v531 = vld [vmem:[#allocation2 + $0x58] sm:$0xff]
        %v532 = vld [vmem:[#allocation2 + $0x60] sm:$0xff]
        %v533 = vld [vmem:[#allocation2 + $0x68] sm:$0xff]
        %v534 = vld [vmem:[#allocation2 + $0x70] sm:$0xff]
        %v535 = vld [vmem:[#allocation2 + $0x78] sm:$0xff]
        %v536 = vld [vmem:[#allocation2 + $0x80] sm:$0xff]
        %v537 = vld [vmem:[#allocation2 + $0x88] sm:$0xff]
        %v538 = vld [vmem:[#allocation2 + $0x90] sm:$0xff]
        %v539 = vld [vmem:[#allocation2 + $0x98] sm:$0xff]
        %v540 = vld [vmem:[#allocation2 + $0xa0] sm:$0xff]
        %v541 = vld [vmem:[#allocation2 + $0xa8] sm:$0xff]
        %v542 = vld [vmem:[#allocation2 + $0xb0] sm:$0xff]
        %v543 = vld [vmem:[#allocation2 + $0xb8] sm:$0xff]
        %v544 = vld [vmem:[#allocation2 + $0xc0] sm:$0xff]
        %v545 = vld [vmem:[#allocation2 + $0xc8] sm:$0xff]
        %v546 = vld [vmem:[#allocation2 + $0xd0] sm:$0xff]
        %v547 = vld [vmem:[#allocation2 + $0xd8] sm:$0xff]
        %v548 = vld [vmem:[#allocation2 + $0xe0] sm:$0xff]
        %v549 = vld [vmem:[#allocation2 + $0xe8] sm:$0xff]
        %v550 = vld [vmem:[#allocation2 + $0xf0] sm:$0xff]
        %v551 = vld [vmem:[#allocation2 + $0xf8] sm:$0xff]
        %v552 = vld [vmem:[%s3] sm:$0xf]
        %v554 = vlaneseq
        %v555 = vshrl.u32 %v554, 7
        %v556 = vsub.s32 0, %v555
        %v557 = vrot.slane %v552, %v556
        %v558 = vlaneseq
        %v559 = vshrl.u32 %v558, 7
        %v560 = vsub.s32 1, %v559
        %v561 = vrot.slane %v552, %v560
        %v562 = vlaneseq
        %v563 = vshrl.u32 %v562, 7
        %v564 = vsub.s32 2, %v563
        %v565 = vrot.slane %v552, %v564
        %v566 = vlaneseq
        %v567 = vshrl.u32 %v566, 7
        %v568 = vsub.s32 3, %v567
        %v569 = vrot.slane %v552, %v568
        %v606 = vunpack.c.l.b16 %v520
        %v607 = vunpack.c.h.b16 %v520
        %v608 = vunpack.c.l.b16 %v521
        %v609 = vunpack.c.h.b16 %v521
        %v610 = vunpack.c.l.b16 %v522
        %v611 = vunpack.c.h.b16 %v522
        %v612 = vunpack.c.l.b16 %v523
        %v613 = vunpack.c.h.b16 %v523
        %v614 = vunpack.c.l.b16 %v524
        %v615 = vunpack.c.h.b16 %v524
        %v616 = vunpack.c.l.b16 %v525
        %v617 = vunpack.c.h.b16 %v525
        %v618 = vunpack.c.l.b16 %v526
        %v619 = vunpack.c.h.b16 %v526
        %v620 = vunpack.c.l.b16 %v527
        %v621 = vunpack.c.h.b16 %v527
        %v622 = vunpack.c.l.b16 %v528
        %v623 = vunpack.c.h.b16 %v528
        %v624 = vunpack.c.l.b16 %v529
        %v625 = vunpack.c.h.b16 %v529
        %v626 = vunpack.c.l.b16 %v530
        %v627 = vunpack.c.h.b16 %v530
        %v628 = vunpack.c.l.b16 %v531
        %v629 = vunpack.c.h.b16 %v531
        %v630 = vunpack.c.l.b16 %v532
        %v631 = vunpack.c.h.b16 %v532
        %v632 = vunpack.c.l.b16 %v533
        %v633 = vunpack.c.h.b16 %v533
        %v634 = vunpack.c.l.b16 %v534
        %v635 = vunpack.c.h.b16 %v534
        %v636 = vunpack.c.l.b16 %v535
        %v637 = vunpack.c.h.b16 %v535
        %v638 = vunpack.c.l.b16 %v536
        %v639 = vunpack.c.h.b16 %v536
        %v640 = vunpack.c.l.b16 %v537
        %v641 = vunpack.c.h.b16 %v537
        %v642 = vunpack.c.l.b16 %v538
        %v643 = vunpack.c.h.b16 %v538
        %v644 = vunpack.c.l.b16 %v539
        %v645 = vunpack.c.h.b16 %v539
        %v646 = vunpack.c.l.b16 %v540
        %v647 = vunpack.c.h.b16 %v540
        %v648 = vunpack.c.l.b16 %v541
        %v649 = vunpack.c.h.b16 %v541
        %v650 = vunpack.c.l.b16 %v542
        %v651 = vunpack.c.h.b16 %v542
        %v652 = vunpack.c.l.b16 %v543
        %v653 = vunpack.c.h.b16 %v543
        %v654 = vunpack.c.l.b16 %v544
        %v655 = vunpack.c.h.b16 %v544
        %v656 = vunpack.c.l.b16 %v545
        %v657 = vunpack.c.h.b16 %v545
        %v658 = vunpack.c.l.b16 %v546
        %v659 = vunpack.c.h.b16 %v546
        %v660 = vunpack.c.l.b16 %v547
        %v661 = vunpack.c.h.b16 %v547
        %v662 = vunpack.c.l.b16 %v548
        %v663 = vunpack.c.h.b16 %v548
        %v664 = vunpack.c.l.b16 %v549
        %v665 = vunpack.c.h.b16 %v549
        %v666 = vunpack.c.l.b16 %v550
        %v667 = vunpack.c.h.b16 %v550
        %v668 = vunpack.c.l.b16 %v551
        %v669 = vunpack.c.h.b16 %v551
        %v670 = vpack.c.b16 %v610, %v606
        %v671 = vpack.c.b16 %v611, %v607
        %v672 = vpack.c.b16 %v612, %v608
        %v673 = vpack.c.b16 %v613, %v609
        %v674 = vpack.c.b16 %v618, %v614
        %v675 = vpack.c.b16 %v619, %v615
        %v676 = vpack.c.b16 %v620, %v616
        %v677 = vpack.c.b16 %v621, %v617
        %v678 = vpack.c.b16 %v626, %v622
        %v679 = vpack.c.b16 %v627, %v623
        %v680 = vpack.c.b16 %v628, %v624
        %v681 = vpack.c.b16 %v629, %v625
        %v682 = vpack.c.b16 %v634, %v630
        %v683 = vpack.c.b16 %v635, %v631
        %v684 = vpack.c.b16 %v636, %v632
        %v685 = vpack.c.b16 %v637, %v633
        %v686 = vpack.c.b16 %v642, %v638
        %v687 = vpack.c.b16 %v643, %v639
        %v688 = vpack.c.b16 %v644, %v640
        %v689 = vpack.c.b16 %v645, %v641
        %v690 = vpack.c.b16 %v650, %v646
        %v691 = vpack.c.b16 %v651, %v647
        %v692 = vpack.c.b16 %v652, %v648
        %v693 = vpack.c.b16 %v653, %v649
        %v694 = vpack.c.b16 %v658, %v654
        %v695 = vpack.c.b16 %v659, %v655
        %v696 = vpack.c.b16 %v660, %v656
        %v697 = vpack.c.b16 %v661, %v657
        %v698 = vpack.c.b16 %v666, %v662
        %v699 = vpack.c.b16 %v667, %v663
        %v700 = vpack.c.b16 %v668, %v664
        %v701 = vpack.c.b16 %v669, %v665
        %734 = vmatprep.subr.bf16.mxu0 %v699
        %735 = vmatpush1.bf16.msra.mxu0 %v698
        %736 = vmatprep.subr.bf16.mxu0 %v695
        %737 = vmatpush1.bf16.msra.mxu0 %v694
        %738 = vmatprep.subr.bf16.mxu0 %v691
        %739 = vmatpush1.bf16.msra.mxu0 %v690
        %740 = vmatprep.subr.bf16.mxu0 %v687
        %741 = vmatpush1.bf16.msra.mxu0 %v686
        %742 = vmatprep.subr.bf16.mxu0 %v683
        %743 = vmatpush1.bf16.msra.mxu0 %v682
        %744 = vmatprep.subr.bf16.mxu0 %v679
        %745 = vmatpush1.bf16.msra.mxu0 %v678
        %746 = vmatprep.subr.bf16.mxu0 %v675
        %747 = vmatpush1.bf16.msra.mxu0 %v674
        %748 = vmatprep.subr.bf16.mxu0 %v671
        %749 = vmatpush1.bf16.msra.mxu0 %v670
        %750 = vmatprep.subr.bf16.mxu0 0
        %751 = vmatpush2.bf16.msra.mxu0 0
        %752 = vmatprep.subr.bf16.mxu0 0
        %753 = vmatpush2.bf16.msra.mxu0 0
        %754 = vmatprep.subr.bf16.mxu0 0
        %755 = vmatpush2.bf16.msra.mxu0 0
        %756 = vmatprep.subr.bf16.mxu0 0
        %757 = vmatpush2.bf16.msra.mxu0 0
        %758 = vmatprep.subr.bf16.mxu0 0
        %759 = vmatpush2.bf16.msra.mxu0 0
        %760 = vmatprep.subr.bf16.mxu0 0
        %761 = vmatpush2.bf16.msra.mxu0 0
        %762 = vmatprep.subr.bf16.mxu0 0
        %763 = vmatpush2.bf16.msra.mxu0 0
        %764 = vmatprep.subr.bf16.mxu0 0
        %765 = vmatpush2.bf16.msra.mxu0 0
        %766 = vmatprep.mubr.bf16.mxu0 0
        %767 = vmatmul.mubr.bf16.gmra.mxu0 %v519
        %v768 = vpop.f32.mrf.mxu0
        %v769 = vadd.f32 %v557, %v768
        %v770 = vpop.f32.mrf.mxu0
        %v771 = vadd.f32 %v561, %v770
        %v772 = vpop.f32.mrf.mxu0
        %v773 = vadd.f32 %v557, %v772
        %v774 = vpop.f32.mrf.mxu0
        %v775 = vadd.f32 %v561, %v774
        %776 = vdwg.mxu0
        %777 = vmatprep.subr.bf16.mxu0 %v701
        %778 = vmatpush1.bf16.msra.mxu0 %v700
        %779 = vmatprep.subr.bf16.mxu0 %v697
        %780 = vmatpush1.bf16.msra.mxu0 %v696
        %781 = vmatprep.subr.bf16.mxu0 %v693
        %782 = vmatpush1.bf16.msra.mxu0 %v692
        %783 = vmatprep.subr.bf16.mxu0 %v689
        %784 = vmatpush1.bf16.msra.mxu0 %v688
        %785 = vmatprep.subr.bf16.mxu0 %v685
        %786 = vmatpush1.bf16.msra.mxu0 %v684
        %787 = vmatprep.subr.bf16.mxu0 %v681
        %788 = vmatpush1.bf16.msra.mxu0 %v680
        %789 = vmatprep.subr.bf16.mxu0 %v677
        %790 = vmatpush1.bf16.msra.mxu0 %v676
        %791 = vmatprep.subr.bf16.mxu0 %v673
        %792 = vmatpush1.bf16.msra.mxu0 %v672
        %793 = vmatprep.subr.bf16.mxu0 0
        %794 = vmatpush2.bf16.msra.mxu0 0
        %795 = vmatprep.subr.bf16.mxu0 0
        %796 = vmatpush2.bf16.msra.mxu0 0
        %797 = vmatprep.subr.bf16.mxu0 0
        %798 = vmatpush2.bf16.msra.mxu0 0
        %799 = vmatprep.subr.bf16.mxu0 0
        %800 = vmatpush2.bf16.msra.mxu0 0
        %801 = vmatprep.subr.bf16.mxu0 0
        %802 = vmatpush2.bf16.msra.mxu0 0
        %803 = vmatprep.subr.bf16.mxu0 0
        %804 = vmatpush2.bf16.msra.mxu0 0
        %805 = vmatprep.subr.bf16.mxu0 0
        %806 = vmatpush2.bf16.msra.mxu0 0
        %807 = vmatprep.subr.bf16.mxu0 0
        %808 = vmatpush2.bf16.msra.mxu0 0
        %809 = vmatprep.mubr.bf16.mxu0 0
        %810 = vmatmul.mubr.bf16.gmra.mxu0 %v519
        %v811 = vpop.f32.mrf.mxu0
        %v812 = vadd.f32 %v565, %v811
        %v813 = vpop.f32.mrf.mxu0
        %v814 = vadd.f32 %v569, %v813
        %v815 = vpop.f32.mrf.mxu0
        %v816 = vadd.f32 %v565, %v815
        %v817 = vpop.f32.mrf.mxu0
        %v818 = vadd.f32 %v569, %v817
        %819 = vdwg.mxu0
        %v820 = vpack.c.bf16 %v773, %v769
        %v821 = vpack.c.bf16 %v775, %v771
        %v822 = vpack.c.bf16 %v816, %v812
        %v823 = vpack.c.bf16 %v818, %v814
        %v824 = vxor.u32 %v820, 2147516416
        %v825 = vxor.u32 %v821, 2147516416
        %v826 = vxor.u32 %v822, 2147516416
        %v827 = vxor.u32 %v823, 2147516416
        %v829 = vmul.bf16 %v824, 1069105081
        %v830 = vpow.bf16.pop %v829
        %v832 = vmul.bf16 %v825, 1069105081
        %v833 = vpow.bf16.pop %v832
        %v835 = vmul.bf16 %v826, 1069105081
        %v836 = vpow.bf16.pop %v835
        %v838 = vmul.bf16 %v827, 1069105081
        %v839 = vpow.bf16.pop %v838
        %v840 = vadd.bf16 %v830, 1065369472
        %v841 = vadd.bf16 %v833, 1065369472
        %v842 = vadd.bf16 %v836, 1065369472
        %v843 = vadd.bf16 %v839, 1065369472
        %v844 = vrcp.bf16.pop %v840
        %v845 = vmul.bf16 1065369472, %v844
        %v846 = vrcp.bf16.pop %v841
        %v847 = vmul.bf16 1065369472, %v846
        %v848 = vrcp.bf16.pop %v842
        %v849 = vmul.bf16 1065369472, %v848
        %v850 = vrcp.bf16.pop %v843
        %v851 = vmul.bf16 1065369472, %v850
        %v852 = vmul.bf16 %v820, %v845
        %v853 = vmul.bf16 %v821, %v847
        %v854 = vmul.bf16 %v822, %v849
        %v855 = vmul.bf16 %v823, %v851
        %v856 = vld [vmem:[#allocation5] sm:$0xf]
        %v857 = vld [vmem:[#allocation5 + $0x4] sm:$0xf]
        %v858 = vld [vmem:[#allocation5 + $0x8] sm:$0xf]
        %v859 = vld [vmem:[#allocation5 + $0xc] sm:$0xf]
        %v860 = vld [vmem:[#allocation5 + $0x10] sm:$0xf]
        %v861 = vld [vmem:[#allocation5 + $0x14] sm:$0xf]
        %v862 = vld [vmem:[#allocation5 + $0x18] sm:$0xf]
        %v863 = vld [vmem:[#allocation5 + $0x1c] sm:$0xf]
        %v864 = vld [vmem:[#allocation5 + $0x20] sm:$0xf]
        %v865 = vld [vmem:[#allocation5 + $0x24] sm:$0xf]
        %v866 = vld [vmem:[#allocation5 + $0x28] sm:$0xf]
        %v867 = vld [vmem:[#allocation5 + $0x2c] sm:$0xf]
        %v868 = vld [vmem:[#allocation5 + $0x30] sm:$0xf]
        %v869 = vld [vmem:[#allocation5 + $0x34] sm:$0xf]
        %v870 = vld [vmem:[#allocation5 + $0x38] sm:$0xf]
        %v871 = vld [vmem:[#allocation5 + $0x3c] sm:$0xf]
        %v872 = vld [vmem:[#allocation5 + $0x40] sm:$0xf]
        %v873 = vld [vmem:[#allocation5 + $0x44] sm:$0xf]
        %v874 = vld [vmem:[#allocation5 + $0x48] sm:$0xf]
        %v875 = vld [vmem:[#allocation5 + $0x4c] sm:$0xf]
        %v876 = vld [vmem:[#allocation5 + $0x50] sm:$0xf]
        %v877 = vld [vmem:[#allocation5 + $0x54] sm:$0xf]
        %v878 = vld [vmem:[#allocation5 + $0x58] sm:$0xf]
        %v879 = vld [vmem:[#allocation5 + $0x5c] sm:$0xf]
        %v880 = vld [vmem:[#allocation5 + $0x60] sm:$0xf]
        %v881 = vld [vmem:[#allocation5 + $0x64] sm:$0xf]
        %v882 = vld [vmem:[#allocation5 + $0x68] sm:$0xf]
        %v883 = vld [vmem:[#allocation5 + $0x6c] sm:$0xf]
        %v884 = vld [vmem:[#allocation5 + $0x70] sm:$0xf]
        %v885 = vld [vmem:[#allocation5 + $0x74] sm:$0xf]
        %v886 = vld [vmem:[#allocation5 + $0x78] sm:$0xf]
        %v887 = vld [vmem:[#allocation5 + $0x7c] sm:$0xf]
        %v888 = vld [vmem:[#allocation5 + $0x80] sm:$0xf]
        %v889 = vld [vmem:[#allocation5 + $0x84] sm:$0xf]
        %v890 = vld [vmem:[#allocation5 + $0x88] sm:$0xf]
        %v891 = vld [vmem:[#allocation5 + $0x8c] sm:$0xf]
        %v892 = vld [vmem:[#allocation5 + $0x90] sm:$0xf]
        %v893 = vld [vmem:[#allocation5 + $0x94] sm:$0xf]
        %v894 = vld [vmem:[#allocation5 + $0x98] sm:$0xf]
        %v895 = vld [vmem:[#allocation5 + $0x9c] sm:$0xf]
        %v896 = vld [vmem:[#allocation5 + $0xa0] sm:$0xf]
        %v897 = vld [vmem:[#allocation5 + $0xa4] sm:$0xf]
        %v898 = vld [vmem:[#allocation5 + $0xa8] sm:$0xf]
        %v899 = vld [vmem:[#allocation5 + $0xac] sm:$0xf]
        %v900 = vld [vmem:[#allocation5 + $0xb0] sm:$0xf]
        %v901 = vld [vmem:[#allocation5 + $0xb4] sm:$0xf]
        %v902 = vld [vmem:[#allocation5 + $0xb8] sm:$0xf]
        %v903 = vld [vmem:[#allocation5 + $0xbc] sm:$0xf]
        %v904 = vld [vmem:[#allocation5 + $0xc0] sm:$0xf]
        %v905 = vld [vmem:[#allocation5 + $0xc4] sm:$0xf]
        %v906 = vld [vmem:[#allocation5 + $0xc8] sm:$0xf]
        %v907 = vld [vmem:[#allocation5 + $0xcc] sm:$0xf]
        %v908 = vld [vmem:[#allocation5 + $0xd0] sm:$0xf]
        %v909 = vld [vmem:[#allocation5 + $0xd4] sm:$0xf]
        %v910 = vld [vmem:[#allocation5 + $0xd8] sm:$0xf]
        %v911 = vld [vmem:[#allocation5 + $0xdc] sm:$0xf]
        %v912 = vld [vmem:[#allocation5 + $0xe0] sm:$0xf]
        %v913 = vld [vmem:[#allocation5 + $0xe4] sm:$0xf]
        %v914 = vld [vmem:[#allocation5 + $0xe8] sm:$0xf]
        %v915 = vld [vmem:[#allocation5 + $0xec] sm:$0xf]
        %v916 = vld [vmem:[#allocation5 + $0xf0] sm:$0xf]
        %v917 = vld [vmem:[#allocation5 + $0xf4] sm:$0xf]
        %v918 = vld [vmem:[#allocation5 + $0xf8] sm:$0xf]
        %v919 = vld [vmem:[#allocation5 + $0xfc] sm:$0xf]
        %v920 = vld [vmem:[%s5] sm:$0x1]
        %v922 = vlaneseq
        %v923 = vshrl.u32 %v922, 7
        %v924 = vsub.s32 0, %v923
        %v925 = vrot.slane %v920, %v924
        %v991 = vunpack.c.l.b16 %v856
        %v992 = vunpack.c.l.b16 %v857
        %v993 = vunpack.c.l.b16 %v858
        %v994 = vunpack.c.l.b16 %v859
        %v995 = vunpack.c.l.b16 %v860
        %v996 = vunpack.c.l.b16 %v861
        %v997 = vunpack.c.l.b16 %v862
        %v998 = vunpack.c.l.b16 %v863
        %v999 = vunpack.c.l.b16 %v864
        %v1000 = vunpack.c.l.b16 %v865
        %v1001 = vunpack.c.l.b16 %v866
        %v1002 = vunpack.c.l.b16 %v867
        %v1003 = vunpack.c.l.b16 %v868
        %v1004 = vunpack.c.l.b16 %v869
        %v1005 = vunpack.c.l.b16 %v870
        %v1006 = vunpack.c.l.b16 %v871
        %v1007 = vunpack.c.l.b16 %v872
        %v1008 = vunpack.c.l.b16 %v873
        %v1009 = vunpack.c.l.b16 %v874
        %v1010 = vunpack.c.l.b16 %v875
        %v1011 = vunpack.c.l.b16 %v876
        %v1012 = vunpack.c.l.b16 %v877
        %v1013 = vunpack.c.l.b16 %v878
        %v1014 = vunpack.c.l.b16 %v879
        %v1015 = vunpack.c.l.b16 %v880
        %v1016 = vunpack.c.l.b16 %v881
        %v1017 = vunpack.c.l.b16 %v882
        %v1018 = vunpack.c.l.b16 %v883
        %v1019 = vunpack.c.l.b16 %v884
        %v1020 = vunpack.c.l.b16 %v885
        %v1021 = vunpack.c.l.b16 %v886
        %v1022 = vunpack.c.l.b16 %v887
        %v1023 = vunpack.c.l.b16 %v888
        %v1024 = vunpack.c.l.b16 %v889
        %v1025 = vunpack.c.l.b16 %v890
        %v1026 = vunpack.c.l.b16 %v891
        %v1027 = vunpack.c.l.b16 %v892
        %v1028 = vunpack.c.l.b16 %v893
        %v1029 = vunpack.c.l.b16 %v894
        %v1030 = vunpack.c.l.b16 %v895
        %v1031 = vunpack.c.l.b16 %v896
        %v1032 = vunpack.c.l.b16 %v897
        %v1033 = vunpack.c.l.b16 %v898
        %v1034 = vunpack.c.l.b16 %v899
        %v1035 = vunpack.c.l.b16 %v900
        %v1036 = vunpack.c.l.b16 %v901
        %v1037 = vunpack.c.l.b16 %v902
        %v1038 = vunpack.c.l.b16 %v903
        %v1039 = vunpack.c.l.b16 %v904
        %v1040 = vunpack.c.l.b16 %v905
        %v1041 = vunpack.c.l.b16 %v906
        %v1042 = vunpack.c.l.b16 %v907
        %v1043 = vunpack.c.l.b16 %v908
        %v1044 = vunpack.c.l.b16 %v909
        %v1045 = vunpack.c.l.b16 %v910
        %v1046 = vunpack.c.l.b16 %v911
        %v1047 = vunpack.c.l.b16 %v912
        %v1048 = vunpack.c.l.b16 %v913
        %v1049 = vunpack.c.l.b16 %v914
        %v1050 = vunpack.c.l.b16 %v915
        %v1051 = vunpack.c.l.b16 %v916
        %v1052 = vunpack.c.l.b16 %v917
        %v1053 = vunpack.c.l.b16 %v918
        %v1054 = vunpack.c.l.b16 %v919
        %v1055 = vpack.c.b16 %v992, %v991
        %v1056 = vpack.c.b16 %v994, %v993
        %v1057 = vpack.c.b16 %v996, %v995
        %v1058 = vpack.c.b16 %v998, %v997
        %v1059 = vpack.c.b16 %v1000, %v999
        %v1060 = vpack.c.b16 %v1002, %v1001
        %v1061 = vpack.c.b16 %v1004, %v1003
        %v1062 = vpack.c.b16 %v1006, %v1005
        %v1063 = vpack.c.b16 %v1008, %v1007
        %v1064 = vpack.c.b16 %v1010, %v1009
        %v1065 = vpack.c.b16 %v1012, %v1011
        %v1066 = vpack.c.b16 %v1014, %v1013
        %v1067 = vpack.c.b16 %v1016, %v1015
        %v1068 = vpack.c.b16 %v1018, %v1017
        %v1069 = vpack.c.b16 %v1020, %v1019
        %v1070 = vpack.c.b16 %v1022, %v1021
        %v1071 = vpack.c.b16 %v1024, %v1023
        %v1072 = vpack.c.b16 %v1026, %v1025
        %v1073 = vpack.c.b16 %v1028, %v1027
        %v1074 = vpack.c.b16 %v1030, %v1029
        %v1075 = vpack.c.b16 %v1032, %v1031
        %v1076 = vpack.c.b16 %v1034, %v1033
        %v1077 = vpack.c.b16 %v1036, %v1035
        %v1078 = vpack.c.b16 %v1038, %v1037
        %v1079 = vpack.c.b16 %v1040, %v1039
        %v1080 = vpack.c.b16 %v1042, %v1041
        %v1081 = vpack.c.b16 %v1044, %v1043
        %v1082 = vpack.c.b16 %v1046, %v1045
        %v1083 = vpack.c.b16 %v1048, %v1047
        %v1084 = vpack.c.b16 %v1050, %v1049
        %v1085 = vpack.c.b16 %v1052, %v1051
        %v1086 = vpack.c.b16 %v1054, %v1053
        %1119 = vmatprep.subr.bf16.mxu0 0
        %1120 = vmatpush1.bf16.msra.mxu0 %v1062
        %1121 = vmatprep.subr.bf16.mxu0 0
        %1122 = vmatpush1.bf16.msra.mxu0 %v1061
        %1123 = vmatprep.subr.bf16.mxu0 0
        %1124 = vmatpush1.bf16.msra.mxu0 %v1060
        %1125 = vmatprep.subr.bf16.mxu0 0
        %1126 = vmatpush1.bf16.msra.mxu0 %v1059
        %1127 = vmatprep.subr.bf16.mxu0 0
        %1128 = vmatpush1.bf16.msra.mxu0 %v1058
        %1129 = vmatprep.subr.bf16.mxu0 0
        %1130 = vmatpush1.bf16.msra.mxu0 %v1057
        %1131 = vmatprep.subr.bf16.mxu0 0
        %1132 = vmatpush1.bf16.msra.mxu0 %v1056
        %1133 = vmatprep.subr.bf16.mxu0 0
        %1134 = vmatpush1.bf16.msra.mxu0 %v1055
        %1135 = vmatprep.subr.bf16.mxu0 0
        %1136 = vmatpush2.bf16.msra.mxu0 %v1070
        %1137 = vmatprep.subr.bf16.mxu0 0
        %1138 = vmatpush2.bf16.msra.mxu0 %v1069
        %1139 = vmatprep.subr.bf16.mxu0 0
        %1140 = vmatpush2.bf16.msra.mxu0 %v1068
        %1141 = vmatprep.subr.bf16.mxu0 0
        %1142 = vmatpush2.bf16.msra.mxu0 %v1067
        %1143 = vmatprep.subr.bf16.mxu0 0
        %1144 = vmatpush2.bf16.msra.mxu0 %v1066
        %1145 = vmatprep.subr.bf16.mxu0 0
        %1146 = vmatpush2.bf16.msra.mxu0 %v1065
        %1147 = vmatprep.subr.bf16.mxu0 0
        %1148 = vmatpush2.bf16.msra.mxu0 %v1064
        %1149 = vmatprep.subr.bf16.mxu0 0
        %1150 = vmatpush2.bf16.msra.mxu0 %v1063
        %1151 = vmatprep.mubr.bf16.mxu0 %v853
        %1152 = vmatmul.mubr.bf16.gmra.mxu0 %v852
        %v1153 = vpop.f32.mrf.mxu0
        %v1154 = vadd.f32 %v925, %v1153
        %v1155 = vpop.f32.mrf.mxu0
        %v1156 = vpop.f32.mrf.mxu0
        %v1157 = vadd.f32 %v925, %v1156
        %v1158 = vpop.f32.mrf.mxu0
        %1159 = vdwg.mxu0
        %1160 = vmatprep.subr.bf16.mxu0 0
        %1161 = vmatpush1.bf16.msra.mxu0 %v1078
        %1162 = vmatprep.subr.bf16.mxu0 0
        %1163 = vmatpush1.bf16.msra.mxu0 %v1077
        %1164 = vmatprep.subr.bf16.mxu0 0
        %1165 = vmatpush1.bf16.msra.mxu0 %v1076
        %1166 = vmatprep.subr.bf16.mxu0 0
        %1167 = vmatpush1.bf16.msra.mxu0 %v1075
        %1168 = vmatprep.subr.bf16.mxu0 0
        %1169 = vmatpush1.bf16.msra.mxu0 %v1074
        %1170 = vmatprep.subr.bf16.mxu0 0
        %1171 = vmatpush1.bf16.msra.mxu0 %v1073
        %1172 = vmatprep.subr.bf16.mxu0 0
        %1173 = vmatpush1.bf16.msra.mxu0 %v1072
        %1174 = vmatprep.subr.bf16.mxu0 0
        %1175 = vmatpush1.bf16.msra.mxu0 %v1071
        %1176 = vmatprep.subr.bf16.mxu0 0
        %1177 = vmatpush2.bf16.msra.mxu0 %v1086
        %1178 = vmatprep.subr.bf16.mxu0 0
        %1179 = vmatpush2.bf16.msra.mxu0 %v1085
        %1180 = vmatprep.subr.bf16.mxu0 0
        %1181 = vmatpush2.bf16.msra.mxu0 %v1084
        %1182 = vmatprep.subr.bf16.mxu0 0
        %1183 = vmatpush2.bf16.msra.mxu0 %v1083
        %1184 = vmatprep.subr.bf16.mxu0 0
        %1185 = vmatpush2.bf16.msra.mxu0 %v1082
        %1186 = vmatprep.subr.bf16.mxu0 0
        %1187 = vmatpush2.bf16.msra.mxu0 %v1081
        %1188 = vmatprep.subr.bf16.mxu0 0
        %1189 = vmatpush2.bf16.msra.mxu0 %v1080
        %1190 = vmatprep.subr.bf16.mxu0 0
        %1191 = vmatpush2.bf16.msra.mxu0 %v1079
        %1192 = vmatprep.mubr.bf16.mxu0 %v855
        %1193 = vmatmul.mubr.bf16.gmra.mxu0 %v854
        %v1194 = vpop.f32.mrf.mxu0
        %v1195 = vadd.f32 %v1154, %v1194
        %v1196 = vpop.f32.mrf.mxu0
        %v1197 = vpop.f32.mrf.mxu0
        %v1198 = vadd.f32 %v1157, %v1197
        %v1199 = vpop.f32.mrf.mxu0
        %1200 = vdwg.mxu0
        %1201 = vst [vmem:[%s275] sm:$0xff] %v1195
        %1202 = vst [vmem:[%s275 + $0x8] sm:$0xff] %v1198
        %s1203 = sand.u32 %s161, 1
        %s1204 = scalar_lea.sflag [#allocation4], %s1203
        %s1205 = sand.u32 %s161, 1
        %s1206 = smul.addr %s1205, 16
        %s1207 = scalar_lea.vmem [#allocation7], %s1206
        // Predicated region
        $region53: #{tpu_custom_call.1} parent=43 // pred_check
          %p1208 = pneg %p171
        $region54: #{tpu_custom_call.1} parent=43 // pred_check_branch
          %1210 = sbr.rel (%p1208) target = $region56
        $region55: #{tpu_custom_call.1} parent=43 // pred_region
          %s1211 = smul.u32 2, %s22
          %s1213 = ssub.s32 256, 256
          %1214 = vsyncadd %s1204, %s1213
          %s1215 = smul.addr %s1211, 128
          %s1216 = scalar_lea.hbm %s6, %s1215
          %s1217 = sshll.u32 %s1207, 4
          %s1218 = int_to_ptr.vmem [resolvable:$true] %s1217
          %1223 = dma.vmem_to_hbm [thread:$0]  %s1218, 256, %s1216, %s1204, 128, 128, 8
        $region56: #{tpu_custom_call.1} parent=43 // pred_fallthru
          _
      $region44: #{tpu_custom_call.1} parent=5 // pred_fallthru
        _
      %p1224 = scmp.le.s32.totalorder 2, %s17
      // Predicated region
      $region57: #{tpu_custom_call.1} parent=5 // pred_check
        %p1225 = pneg %p1224
      $region58: #{tpu_custom_call.1} parent=5 // pred_check_branch
        %1227 = sbr.rel (%p1225) target = $region60
      $region59: #{tpu_custom_call.1} parent=5 // pred_region
        %s1228 = ssub.s32 %s17, 2
        // Predicated region
        $region61: #{tpu_custom_call.1} parent=59 // pred_check
          %p1229 = pneg %p177
        $region62: #{tpu_custom_call.1} parent=59 // pred_check_branch
          %1231 = sbr.rel (%p1229) target = $region64
        $region63: #{tpu_custom_call.1} parent=59 // pred_region
          %s1232 = sand.u32 %s162, 1
          %s1233 = scalar_lea.sflag [#allocation4], %s1232
          %s1234 = sand.u32 %s162, 1
          %s1235 = smul.addr %s1234, 16
          %s1236 = scalar_lea.vmem [#allocation7], %s1235
          %1237 = dma.done %s1233, 256
        $region64: #{tpu_custom_call.1} parent=59 // pred_fallthru
          _
      $region60: #{tpu_custom_call.1} parent=5 // pred_fallthru
        _
    $region6: #{tpu_custom_call.1} parent=1 // loop_footer
      %s21 = sadd.s32 1, %s17
    $region7: #{tpu_custom_call.1} parent=1 // loop_footer_branch
      %16 = sbr.rel target = $region3
    $region8: #{tpu_custom_call.1} parent=1 // loop_exit
      _
    %1238 = vsyncpa [#allocation3], 1
    %s1239 = scalar_lea.sflag [#allocation3], 1
    %1240 = vsyncpa %s1239, 1
    %1241 = vsyncpa [#allocation6], 1
    %1242 = vsyncpa [#allocation4], 1
    %s1243 = scalar_lea.sflag [#allocation4], 1
    %1244 = vsyncpa %s1243, 1

</llo_original>
